<compile_context>
chip_gen: v6e
topology: v6e:2x2x1
jax: 0.10.0
libtpu: 0.0.40
codegen_flags: <defaults>
</compile_context>

<pallas_src>
import functools

import jax
import jax.numpy as jnp
from jax import lax
from jax.experimental import pallas as pl
from jax.experimental.pallas import tpu as pltpu


# (parity, shift) -> kernel-tap index, valid for k=3, stride=2, pad=1, out_pad=1
_KMAP = {(0, 0): 1, (1, 0): 2, (1, 1): 0}


# ------------------------------ Pallas kernels --------------------------------

def deconv_stats_kernel(x_ref, w_ref, sum_ref, m2_ref):
    """Stats-only pass: sub-pixel deconv GEMM block + per-block BN partials.

    x_ref:   (8*Cin, tm)    bf16  shifted-input block (M on lanes)
    w_ref:   (8*Cout, 8*Cin) bf16 sub-pixel weight (grid-invariant)
    sum_ref: (1, 8*Cout, 1) f32   per-row block sum
    m2_ref:  (1, 8*Cout, 1) f32   per-row centered sum of squares (block M2)
    """
    y = jnp.dot(w_ref[...], x_ref[...],
                preferred_element_type=jnp.float32)          # (8*Cout, tm) f32
    inv_m = 1.0 / float(x_ref.shape[1])
    s = jnp.sum(y, axis=1, keepdims=True)                    # (8*Cout, 1)
    d = y - s * inv_m
    m2 = jnp.sum(d * d, axis=1, keepdims=True)               # centered M2
    sum_ref[0] = s
    m2_ref[0] = m2


def deconv_bn_act_kernel(x_ref, w_ref, scale_ref, shift_ref, o_ref, *,
                         neg_slope):
    """Recompute the deconv GEMM, fuse BN affine + LeakyReLU, store bf16."""
    y = jnp.dot(w_ref[...], x_ref[...],
                preferred_element_type=jnp.float32)          # (8*Cout, tn) f32
    z = y * scale_ref[...] + shift_ref[...]                  # f32 elementwise
    z = jnp.where(z >= 0.0, z, neg_slope * z)
    o_ref[...] = z.astype(o_ref.dtype)                       # bf16 store only


# ------------------------------ host-side prep --------------------------------

def _build_subpixel_weight(wt):
    """PyTorch ConvTranspose3d weight [Cin, Cout, 3,3,3] -> Wall [8*Cout, 8*Cin].

    Row = cout*8 + (pd*4+ph*2+pw); col = (dd*4+dh*2+dw)*Cin + cin.
    Invalid (parity, shift) combinations stay zero.
    """
    cin, cout = wt.shape[0], wt.shape[1]
    wall = jnp.zeros((8 * cout, 8 * cin), jnp.float32)
    for pd in (0, 1):
        for ph in (0, 1):
            for pw in (0, 1):
                p = pd * 4 + ph * 2 + pw
                for dd in (0, 1):
                    for dh in (0, 1):
                        for dw in (0, 1):
                            if ((pd, dd) not in _KMAP or (ph, dh) not in _KMAP
                                    or (pw, dw) not in _KMAP):
                                continue
                            s = dd * 4 + dh * 2 + dw
                            kd = _KMAP[(pd, dd)]
                            kh = _KMAP[(ph, dh)]
                            kw = _KMAP[(pw, dw)]
                            wall = wall.at[p::8, s * cin:(s + 1) * cin].set(
                                wt[:, :, kd, kh, kw].T)
    return wall


def _build_shifted_input(x):
    """x [N, Cin, D, H, W] -> Xall [8*Cin, N*D*H*W] (8 unit-shift views).

    TODO(synk): could be built inside the kernels with pltpu.roll + edge masks
    to avoid the 8x replicated bf16 staging copy in HBM.
    """
    n, cin, d, h, w = x.shape
    xp = jnp.pad(x, ((0, 0), (0, 0), (0, 1), (0, 1), (0, 1)))   # zero at far edge
    xt = jnp.transpose(xp, (1, 0, 2, 3, 4))                     # [Cin, N, D+1, H+1, W+1]
    views = []
    for dd in (0, 1):
        for dh in (0, 1):
            for dw in (0, 1):
                views.append(xt[:, :, dd:dd + d, dh:dh + h, dw:dw + w])
    xall = jnp.stack(views, axis=0)                             # [8, Cin, N, D, H, W]
    return xall.reshape(8 * cin, n * d * h * w)


def _pick_tile(m, want, bytes_per_col, budget=40 * 2**20):
    """Largest 128-multiple tile that divides m, keeps >= 2 grid programs
    (v7x: 2 TensorCores) and fits the per-column VMEM budget."""
    assert m % 128 == 0, m
    t = min(want, m)
    if m >= 256:
        t = min(t, m // 2)                        # >= 2 programs when possible
    t = min(t, max(128, (budget // max(bytes_per_col, 1)) // 128 * 128))
    t = max(128, (t // 128) * 128)
    while m % t:
        t -= 128
    return t


def _vmem_limit(bytes_needed):
    # Explicit limit: v5e's default scoped VMEM is only 16 MiB; stay well
    # under v7x's 64 MiB physical VMEM.
    return int(min(48 * 2**20, max(4 * bytes_needed, 16 * 2**20)))


# ------------------------------ forward ---------------------------------------

def gate_deconv_forward(x, wt, gamma, beta, *, eps=1e-5, neg_slope=0.2,
                        tm=1024, tn=2048):
    """GateDeConv forward.  x: [N, Cin, D, H, W] -> [N, Cout, 2D, 2H, 2W]."""
    n, cin, d, h, w = x.shape
    cout = wt.shape[1]
    assert wt.shape == (cin, cout, 3, 3, 3), \
        "specialized to kernel=3, stride=2, padding=1, output_padding=1"

    m = n * d * h * w                  # input spatial positions (lane dim)
    r = 8 * cout                       # 8 output parities per channel
    k8 = 8 * cin                       # GEMM contraction dim

    # double-buffered bf16 X + f32 GEMM temp + double-buffered bf16 out
    bytes_per_col = 4 * k8 + 8 * r
    tm = _pick_tile(m, tm, bytes_per_col)
    tn = _pick_tile(m, tn, bytes_per_col)
    nblk = m // tm

    xall = _build_shifted_input(x).astype(jnp.bfloat16)         # [8*Cin, M]
    wall = _build_subpixel_weight(wt).astype(jnp.bfloat16)      # [8*Cout, 8*Cin]

    # ---- pass 1: stats-only sub-pixel deconv GEMM ----------------------------
    k1_bytes = 2 * (k8 * tm * 2) + 2 * (r * k8 * 2) + 4 * (r * 4) + r * tm * 4
    bsum, bm2 = pl.pallas_call(
        deconv_stats_kernel,
        out_shape=(
            jax.ShapeDtypeStruct((nblk, r, 1), jnp.float32),
            jax.ShapeDtypeStruct((nblk, r, 1), jnp.float32),
        ),
        grid=(nblk,),
        in_specs=[
            pl.BlockSpec((k8, tm), lambda i: (0, i)),
            pl.BlockSpec((r, k8), lambda i: (0, 0)),
        ],
        out_specs=(
            pl.BlockSpec((1, r, 1), lambda i: (i, 0, 0)),
            pl.BlockSpec((1, r, 1), lambda i: (i, 0, 0)),
        ),
        compiler_params=pltpu.CompilerParams(
            dimension_semantics=("parallel",),
            vmem_limit_bytes=_vmem_limit(k1_bytes)),
    )(xall, wall)

    # ---- tiny XLA glue: Chan-combine block stats -> per-channel scale/shift --
    sums = bsum[:, :, 0].reshape(nblk, cout, 8)
    m2s = bm2[:, :, 0].reshape(nblk, cout, 8)
    cnt_b = float(tm)                                  # elements per (block,parity)
    cnt = float(8 * m)                                 # elements per channel
    mean_b = sums / cnt_b
    mean_c = jnp.sum(sums, axis=(0, 2)) / cnt          # (Cout,)
    m2_c = (jnp.sum(m2s, axis=(0, 2))
            + cnt_b * jnp.sum((mean_b - mean_c[None, :, None]) ** 2, axis=(0, 2)))
    var_c = m2_c / cnt                                 # biased (training-mode) var
    scale_c = gamma * lax.rsqrt(var_c + eps)
    shift_c = beta - mean_c * scale_c
    scale = jnp.repeat(scale_c, 8).reshape(r, 1)       # per (cout, parity) row
    shift = jnp.repeat(shift_c, 8).reshape(r, 1)

    # ---- pass 2: recompute GEMM + BN affine + LeakyReLU (bf16 out) -----------
    k2_bytes = (2 * (k8 * tn * 2) + 2 * (r * k8 * 2) + 4 * (r * 4)
                + 2 * (r * tn * 2) + r * tn * 4)
    kern2 = functools.partial(deconv_bn_act_kernel, neg_slope=neg_slope)
    z = pl.pallas_call(
        kern2,
        out_shape=jax.ShapeDtypeStruct((r, m), jnp.bfloat16),
        grid=(m // tn,),
        in_specs=[
            pl.BlockSpec((k8, tn), lambda i: (0, i)),
            pl.BlockSpec((r, k8), lambda i: (0, 0)),
            pl.BlockSpec((r, 1), lambda i: (0, 0)),
            pl.BlockSpec((r, 1), lambda i: (0, 0)),
        ],
        out_specs=pl.BlockSpec((r, tn), lambda i: (0, i)),
        compiler_params=pltpu.CompilerParams(
            dimension_semantics=("parallel",),
            vmem_limit_bytes=_vmem_limit(k2_bytes)),
    )(xall, wall, scale, shift)

    # ---- depth-to-space (pixel shuffle) back to NCDHW, upcast to f32 ---------
    # TODO(synk): interleaving the W parity in pass 2's store (bitcast-packed
    # pw row pairs) would shrink this further; the strided lane scatter is not
    # expressible as a BlockSpec store, so it stays as one XLA transpose (now
    # on bf16 data, half the bytes of the previous f32 version).
    z = z.reshape(cout, 2, 2, 2, n, d, h, w)
    out = z.transpose(4, 0, 5, 1, 6, 2, 7, 3).astype(jnp.float32)
    return out.reshape(n, cout, 2 * d, 2 * h, 2 * w)


# --------------------------- pure-JAX reference --------------------------------

def gate_deconv_reference(x, wt, bias, gamma, beta, *, eps=1e-5, neg_slope=0.2):
    """ConvTranspose3d(k=3,s=2,p=1,op=1) + BatchNorm3d(train) + LeakyReLU(0.2)."""
    # transposed conv == lhs-dilated conv with flipped, channel-swapped weights
    w_conv = jnp.flip(wt, axis=(2, 3, 4)).transpose(1, 0, 2, 3, 4)  # [Cout,Cin,k,k,k]
    y = lax.conv_general_dilated(
        x, w_conv, window_strides=(1, 1, 1),
        padding=[(1, 2), (1, 2), (1, 2)], lhs_dilation=(2, 2, 2),
        dimension_numbers=("NCDHW", "OIDHW", "NCDHW"))
    y = y + bias.reshape(1, -1, 1, 1, 1)
    mean = jnp.mean(y, axis=(0, 2, 3, 4), keepdims=True)
    var = jnp.mean((y - mean) ** 2, axis=(0, 2, 3, 4), keepdims=True)  # biased
    yb = (y - mean) * lax.rsqrt(var + eps)
    yb = yb * gamma.reshape(1, -1, 1, 1, 1) + beta.reshape(1, -1, 1, 1, 1)
    return jnp.where(yb >= 0.0, yb, neg_slope * yb)


# ------------------------------ main -------------------------------------------

if __name__ == "__main__":
    N, Cin, Cout = 2, 4, 8
    D = H = W = 8
    k = 3

    key = jax.random.PRNGKey(0)
    kx, kw, kb, kg, kbe = jax.random.split(key, 5)

    x = jax.random.normal(kx, (N, Cin, D, H, W), dtype=jnp.float32)
    bound = 1.0 / (Cin * k * k * k) ** 0.5
    # PyTorch ConvTranspose3d weight layout: [Cin, Cout, kd, kh, kw]
    wt = jax.random.uniform(kw, (Cin, Cout, k, k, k), jnp.float32, -bound, bound)
    bias = jax.random.uniform(kb, (Cout,), jnp.float32, -bound, bound)
    # Exercise the BN affine path with non-trivial learnable params.
    gamma = jax.random.uniform(kg, (Cout,), jnp.float32, 0.5, 1.5)
    beta = jax.random.normal(kbe, (Cout,), jnp.float32) * 0.1

    fwd = jax.jit(gate_deconv_forward)
    out = jax.block_until_ready(fwd(x, wt, gamma, beta))

    # Reference includes the conv bias; the Pallas path omits it because it
    # cancels exactly under training-mode BatchNorm mean subtraction.
    ref = gate_deconv_reference(x, wt, bias, gamma, beta)

    assert out.shape == (N, Cout, 2 * D, 2 * H, 2 * W), out.shape
    max_err = float(jnp.max(jnp.abs(out - ref)))
    # bf16 MXU inputs + bf16 activation store (f32 accumulation / f32 BN math)
    # -> a few e-2 of absolute error after BN scaling.
    assert jnp.allclose(out, ref, atol=5e-2, rtol=5e-2), max_err

    print("KERNEL_OK")
</pallas_src>

<mosaic_0001>
module attributes {stable_mosaic.version = 11 : i64} {
  func.func @deconv_stats_kernel(%arg0: i32, %arg1: memref<32x512xbf16, #tpu.memory_space<vmem>>, %arg2: memref<64x32xbf16, #tpu.memory_space<vmem>>, %arg3: memref<1x64x1xf32, #tpu.memory_space<vmem>>, %arg4: memref<1x64x1xf32, #tpu.memory_space<vmem>>) attributes {dimension_semantics = [#tpu.dimension_semantics<parallel>], iteration_bounds = array<i64: 2>, scalar_prefetch = 0 : i64, scratch_operands = 0 : i64, tpu.core_type = #tpu.core_type<tc>, window_params = [{transform_indices = @transform_0, window_bounds = array<i64: 32, 512>}, {pipeline_mode = #tpu.pipeline_mode<synchronous>, transform_indices = @transform_1, window_bounds = array<i64: 64, 32>}, {transform_indices = @transform_2, window_bounds = array<i64: 1, 64, 1>}, {transform_indices = @transform_3, window_bounds = array<i64: 1, 64, 1>}]} {
    %c0 = arith.constant 0 : index
    %c0_0 = arith.constant 0 : index
    %0 = vector.load %arg2[%c0, %c0_0] : memref<64x32xbf16, #tpu.memory_space<vmem>>, vector<64x32xbf16>
    %c0_1 = arith.constant 0 : index
    %c0_2 = arith.constant 0 : index
    %1 = vector.load %arg1[%c0_1, %c0_2] : memref<32x512xbf16, #tpu.memory_space<vmem>>, vector<32x512xbf16>
    %cst = arith.constant dense<0.000000e+00> : vector<64x512xf32>
    %2 = tpu.matmul %0, %1, %cst {dimension_numbers = #tpu.dot_dimension_numbers<[1], [0], [0], [1], [0, 0, 1, 1], [], []>} : vector<64x32xbf16>, vector<32x512xbf16>, vector<64x512xf32> -> vector<64x512xf32>
    %cst_3 = arith.constant dense<0.000000e+00> : vector<64xf32>
    %3 = vector.multi_reduction <add>, %2, %cst_3 [1] : vector<64x512xf32> to vector<64xf32>
    %4 = vector.shape_cast %3 : vector<64xf32> to vector<64x1xf32>
    %cst_4 = arith.constant 0.001953125 : f32
    %5 = vector.broadcast %cst_4 : f32 to vector<64x1xf32>
    %6 = arith.mulf %4, %5 : vector<64x1xf32>
    %7 = vector.broadcast %6 : vector<64x1xf32> to vector<64x512xf32>
    %8 = arith.subf %2, %7 : vector<64x512xf32>
    %9 = arith.mulf %8, %8 : vector<64x512xf32>
    %cst_5 = arith.constant dense<0.000000e+00> : vector<64xf32>
    %10 = vector.multi_reduction <add>, %9, %cst_5 [1] : vector<64x512xf32> to vector<64xf32>
    %11 = vector.shape_cast %10 : vector<64xf32> to vector<64x1xf32>
    %c0_6 = arith.constant 0 : index
    %c0_7 = arith.constant 0 : index
    %c0_8 = arith.constant 0 : index
    %12 = vector.load %arg3[%c0_6, %c0_7, %c0_8] : memref<1x64x1xf32, #tpu.memory_space<vmem>>, vector<1x64x1xf32>
    %13 = vector.shape_cast %12 : vector<1x64x1xf32> to vector<64x1xf32>
    %14 = vector.shape_cast %4 : vector<64x1xf32> to vector<1x64x1xf32>
    tpu.vector_store %arg3[%c0_6, %c0_7, %c0_8], %14 {strides = array<i32>} : memref<1x64x1xf32, #tpu.memory_space<vmem>>, vector<1x64x1xf32>,
    %c0_9 = arith.constant 0 : index
    %c0_10 = arith.constant 0 : index
    %c0_11 = arith.constant 0 : index
    %15 = vector.load %arg4[%c0_9, %c0_10, %c0_11] : memref<1x64x1xf32, #tpu.memory_space<vmem>>, vector<1x64x1xf32>
    %16 = vector.shape_cast %15 : vector<1x64x1xf32> to vector<64x1xf32>
    %17 = vector.shape_cast %11 : vector<64x1xf32> to vector<1x64x1xf32>
    tpu.vector_store %arg4[%c0_9, %c0_10, %c0_11], %17 {strides = array<i32>} : memref<1x64x1xf32, #tpu.memory_space<vmem>>, vector<1x64x1xf32>,
    return
  }
  func.func @transform_0(%arg0: i32) -> (i32, i32) {
    %c0_i32 = arith.constant 0 : i32
    %c0_i32_0 = arith.constant 0 : i32
    return %c0_i32, %arg0 : i32, i32
  }
  func.func @transform_1(%arg0: i32) -> (i32, i32) {
    %c0_i32 = arith.constant 0 : i32
    %c0_i32_0 = arith.constant 0 : i32
    %c0_i32_1 = arith.constant 0 : i32
    return %c0_i32, %c0_i32_0 : i32, i32
  }
  func.func @transform_2(%arg0: i32) -> (i32, i32, i32) {
    %c0_i32 = arith.constant 0 : i32
    %c0_i32_0 = arith.constant 0 : i32
    %c0_i32_1 = arith.constant 0 : i32
    return %arg0, %c0_i32, %c0_i32_0 : i32, i32, i32
  }
  func.func @transform_3(%arg0: i32) -> (i32, i32, i32) {
    %c0_i32 = arith.constant 0 : i32
    %c0_i32_0 = arith.constant 0 : i32
    %c0_i32_1 = arith.constant 0 : i32
    return %arg0, %c0_i32, %c0_i32_0 : i32, i32, i32
  }
}

module attributes {stable_mosaic.version = 11 : i64} {
  func.func @deconv_bn_act_kernel(%arg0: i32, %arg1: memref<32x512xbf16, #tpu.memory_space<vmem>>, %arg2: memref<64x32xbf16, #tpu.memory_space<vmem>>, %arg3: memref<64x1xf32, #tpu.memory_space<vmem>>, %arg4: memref<64x1xf32, #tpu.memory_space<vmem>>, %arg5: memref<64x512xbf16, #tpu.memory_space<vmem>>) attributes {dimension_semantics = [#tpu.dimension_semantics<parallel>], iteration_bounds = array<i64: 2>, scalar_prefetch = 0 : i64, scratch_operands = 0 : i64, tpu.core_type = #tpu.core_type<tc>, window_params = [{transform_indices = @transform_0, window_bounds = array<i64: 32, 512>}, {pipeline_mode = #tpu.pipeline_mode<synchronous>, transform_indices = @transform_1, window_bounds = array<i64: 64, 32>}, {pipeline_mode = #tpu.pipeline_mode<synchronous>, transform_indices = @transform_2, window_bounds = array<i64: 64, 1>}, {pipeline_mode = #tpu.pipeline_mode<synchronous>, transform_indices = @transform_3, window_bounds = array<i64: 64, 1>}, {transform_indices = @transform_4, window_bounds = array<i64: 64, 512>}]} {
    %c0 = arith.constant 0 : index
    %c0_0 = arith.constant 0 : index
    %0 = vector.load %arg2[%c0, %c0_0] : memref<64x32xbf16, #tpu.memory_space<vmem>>, vector<64x32xbf16>
    %c0_1 = arith.constant 0 : index
    %c0_2 = arith.constant 0 : index
    %1 = vector.load %arg1[%c0_1, %c0_2] : memref<32x512xbf16, #tpu.memory_space<vmem>>, vector<32x512xbf16>
    %cst = arith.constant dense<0.000000e+00> : vector<64x512xf32>
    %2 = tpu.matmul %0, %1, %cst {dimension_numbers = #tpu.dot_dimension_numbers<[1], [0], [0], [1], [0, 0, 1, 1], [], []>} : vector<64x32xbf16>, vector<32x512xbf16>, vector<64x512xf32> -> vector<64x512xf32>
    %c0_3 = arith.constant 0 : index
    %c0_4 = arith.constant 0 : index
    %3 = vector.load %arg3[%c0_3, %c0_4] : memref<64x1xf32, #tpu.memory_space<vmem>>, vector<64x1xf32>
    %4 = vector.broadcast %3 : vector<64x1xf32> to vector<64x512xf32>
    %5 = arith.mulf %2, %4 : vector<64x512xf32>
    %c0_5 = arith.constant 0 : index
    %c0_6 = arith.constant 0 : index
    %6 = vector.load %arg4[%c0_5, %c0_6] : memref<64x1xf32, #tpu.memory_space<vmem>>, vector<64x1xf32>
    %7 = vector.broadcast %6 : vector<64x1xf32> to vector<64x512xf32>
    %8 = arith.addf %5, %7 : vector<64x512xf32>
    %cst_7 = arith.constant 0.000000e+00 : f32
    %9 = vector.broadcast %cst_7 : f32 to vector<64x512xf32>
    %10 = arith.cmpf oge, %8, %9 : vector<64x512xf32>
    %cst_8 = arith.constant 2.000000e-01 : f32
    %11 = vector.broadcast %cst_8 : f32 to vector<64x512xf32>
    %12 = arith.mulf %11, %8 : vector<64x512xf32>
    %13 = arith.select %10, %8, %12 : vector<64x512xi1>, vector<64x512xf32>
    %14 = arith.truncf %13 : vector<64x512xf32> to vector<64x512xbf16>
    %c0_9 = arith.constant 0 : index
    %c0_10 = arith.constant 0 : index
    %15 = vector.load %arg5[%c0_9, %c0_10] : memref<64x512xbf16, #tpu.memory_space<vmem>>, vector<64x512xbf16>
    tpu.vector_store %arg5[%c0_9, %c0_10], %14 {strides = array<i32>} : memref<64x512xbf16, #tpu.memory_space<vmem>>, vector<64x512xbf16>,
    return
  }
  func.func @transform_0(%arg0: i32) -> (i32, i32) {
    %c0_i32 = arith.constant 0 : i32
    %c0_i32_0 = arith.constant 0 : i32
    return %c0_i32, %arg0 : i32, i32
  }
  func.func @transform_1(%arg0: i32) -> (i32, i32) {
    %c0_i32 = arith.constant 0 : i32
    %c0_i32_0 = arith.constant 0 : i32
    %c0_i32_1 = arith.constant 0 : i32
    return %c0_i32, %c0_i32_0 : i32, i32
  }
  func.func @transform_2(%arg0: i32) -> (i32, i32) {
    %c0_i32 = arith.constant 0 : i32
    %c0_i32_0 = arith.constant 0 : i32
    %c0_i32_1 = arith.constant 0 : i32
    return %c0_i32, %c0_i32_0 : i32, i32
  }
  func.func @transform_3(%arg0: i32) -> (i32, i32) {
    %c0_i32 = arith.constant 0 : i32
    %c0_i32_0 = arith.constant 0 : i32
    %c0_i32_1 = arith.constant 0 : i32
    return %c0_i32, %c0_i32_0 : i32, i32
  }
  func.func @transform_4(%arg0: i32) -> (i32, i32) {
    %c0_i32 = arith.constant 0 : i32
    %c0_i32_0 = arith.constant 0 : i32
    return %c0_i32, %arg0 : i32, i32
  }
}

</mosaic_0001>

<llo_original>
// kernel: gate_deconv_forward.2
$region0: #{gate_deconv_forward.2}
  #allocation0 [shape = 'u32[]', space=smem, size = 0x4, offset = 0x4, fixed_abs, tag = 'smem constant byte address 0x4 - core index']
  #allocation1 [shape = 'u32[144,128]{1,0:T(1,128)}', space=vmem, size = 0x12000, scoped, tag = 'internal scratch']
  %s0 = inlined_call_operand.vmem [shape: bf16[32,1024], index: 0, kind: input, shape index: {}]
  %s1 = inlined_call_operand.vmem [shape: bf16[64,32], index: 1, kind: input, shape index: {}]
  %s2 = inlined_call_operand.vmem [shape: f32[2,64,1], index: 2, kind: output, shape index: {0}]
  %s3 = inlined_call_operand.vmem [shape: f32[2,64,1], index: 3, kind: output, shape index: {1}]
  %4 = xla_tuple %s2, %s3
  %s5 = sld [smem:[#allocation0]]
  $region72: #{gate_deconv_forward.2} parent=0
    _
  %s7 = ssub.s32 1, %s5
  %s8 = scalar_select 0, %s7, %s5
  $region1: #{gate_deconv_forward.2} parent=0
    #allocation2 [shape = 'u8[65536]{0}', space=vmem, size = 0x10000, scoped, tag = 'input window, operand 0']
    loop: start=0, step=1, limit=4
    $region2: #{gate_deconv_forward.2} parent=1 // loop_pre_header
      _
    $region3: #{gate_deconv_forward.2} parent=1 // loop_header
      %s10 = sphi 0, %s14
      %p11 = scmp.ge.s32.totalorder %s10, 4
      %s20 = sphi 0, %s22
      %s23 = sphi 0, %s20
      %s24 = sphi 0, %s23
      %s40 = sphi 0, %s24
      %s44 = sphi 0, %s44
      %s46 = sphi 0, %s44
      %s47 = sphi 0, %s46
      %s61 = sphi 0, %s47
      %s67 = sphi 0, %s69
      %s70 = sphi 0, %s67
      %s71 = sphi 0, %s70
      %s87 = sphi 0, %s71
      %s93 = sphi 0, %s95
      %s96 = sphi 0, %s93
      %s97 = sphi 0, %s96
      %s113 = sphi 0, %s97
    $region4: #{gate_deconv_forward.2} parent=1 // loop_header_branch
      %13 = sbr.rel (%p11) target = $region8
    $region5: #{gate_deconv_forward.2} parent=1 // loop_body
      %s15 = ssub.s32 %s10, 1
      %s16 = ssub.s32 %s10, 2
      %s17 = sadd.s32 %s10, 1
      %s18 = ssub.s32 %s10, %s17
      %p19 = scmp.eq.s32.totalorder %s18, 0
      %s21 = sadd.s32 %s20, 1
      %s22 = scalar_select %p19, %s20, %s21
      %p25 = pneg %p19
      %p26 = scmp.eq.s32.totalorder %s10, 1
      %p27 = por %p25, %p26
      %p28 = scmp.ne.s32.totalorder %s20, %s23
      %p29 = scmp.eq.s32.totalorder %s10, 0
      %p30 = por %p28, %p29
      %p31 = scmp.ne.s32.totalorder %s20, %s23
      %p32 = scmp.eq.s32.totalorder %s15, 1
      %p33 = por %p31, %p32
      %p34 = scmp.ne.s32.totalorder %s23, %s24
      %p35 = scmp.eq.s32.totalorder %s15, 0
      %p36 = por %p34, %p35
      %p37 = scmp.ne.s32.totalorder %s23, %s24
      %p38 = scmp.eq.s32.totalorder %s16, 1
      %p39 = por %p37, %p38
      %p41 = scmp.ne.s32.totalorder %s24, %s40
      %p42 = scmp.eq.s32.totalorder %s16, 0
      %p43 = por %p41, %p42
      %s45 = sadd.s32 %s44, 1
      %p48 = scmp.eq.s32.totalorder %s10, 1
      %p49 = scmp.ne.s32.totalorder %s44, %s46
      %p50 = scmp.eq.s32.totalorder %s10, 0
      %p51 = por %p49, %p50
      %p52 = scmp.ne.s32.totalorder %s44, %s46
      %p53 = scmp.eq.s32.totalorder %s15, 1
      %p54 = por %p52, %p53
      %p55 = scmp.ne.s32.totalorder %s46, %s47
      %p56 = scmp.eq.s32.totalorder %s15, 0
      %p57 = por %p55, %p56
      %p58 = scmp.ne.s32.totalorder %s46, %s47
      %p59 = scmp.eq.s32.totalorder %s16, 1
      %p60 = por %p58, %p59
      %p62 = scmp.ne.s32.totalorder %s47, %s61
      %p63 = scmp.eq.s32.totalorder %s16, 0
      %p64 = por %p62, %p63
      %s65 = ssub.s32 %s10, %s17
      %p66 = scmp.eq.s32.totalorder %s65, 0
      %s68 = sadd.s32 %s67, 1
      %s69 = scalar_select %p66, %s67, %s68
      %p72 = pneg %p66
      %p73 = scmp.eq.s32.totalorder %s10, 1
      %p74 = por %p72, %p73
      %p75 = scmp.ne.s32.totalorder %s67, %s70
      %p76 = scmp.eq.s32.totalorder %s10, 0
      %p77 = por %p75, %p76
      %p78 = scmp.ne.s32.totalorder %s67, %s70
      %p79 = scmp.eq.s32.totalorder %s15, 1
      %p80 = por %p78, %p79
      %p81 = scmp.ne.s32.totalorder %s70, %s71
      %p82 = scmp.eq.s32.totalorder %s15, 0
      %p83 = por %p81, %p82
      %p84 = scmp.ne.s32.totalorder %s70, %s71
      %p85 = scmp.eq.s32.totalorder %s16, 1
      %p86 = por %p84, %p85
      %p88 = scmp.ne.s32.totalorder %s71, %s87
      %p89 = scmp.eq.s32.totalorder %s16, 0
      %p90 = por %p88, %p89
      %s91 = ssub.s32 %s10, %s17
      %p92 = scmp.eq.s32.totalorder %s91, 0
      %s94 = sadd.s32 %s93, 1
      %s95 = scalar_select %p92, %s93, %s94
      %p98 = pneg %p92
      %p99 = scmp.eq.s32.totalorder %s10, 1
      %p100 = por %p98, %p99
      %p101 = scmp.ne.s32.totalorder %s93, %s96
      %p102 = scmp.eq.s32.totalorder %s10, 0
      %p103 = por %p101, %p102
      %p104 = scmp.ne.s32.totalorder %s93, %s96
      %p105 = scmp.eq.s32.totalorder %s15, 1
      %p106 = por %p104, %p105
      %p107 = scmp.ne.s32.totalorder %s96, %s97
      %p108 = scmp.eq.s32.totalorder %s15, 0
      %p109 = por %p107, %p108
      %p110 = scmp.ne.s32.totalorder %s96, %s97
      %p111 = scmp.eq.s32.totalorder %s16, 1
      %p112 = por %p110, %p111
      %p114 = scmp.ne.s32.totalorder %s97, %s113
      %p115 = scmp.eq.s32.totalorder %s16, 0
      %p116 = por %p114, %p115
      %p117 = scmp.le.s32.totalorder 1, %s10
      %p118 = scmp.lt.s32.totalorder %s10, 3
      %p119 = pnand %p117, %p118
      %p120 = pneg %p119
      // Predicated region
      $region9: #{gate_deconv_forward.2} parent=5 // pred_check
        _
      $region10: #{gate_deconv_forward.2} parent=5 // pred_check_branch
        %122 = sbr.rel (%p119) target = $region12
      $region11: #{gate_deconv_forward.2} parent=5 // pred_region
        %s123 = ssub.s32 %s10, 1
        // Predicated region
        $region13: #{gate_deconv_forward.2} parent=11 // pred_check
          %p124 = pneg %p57
        $region14: #{gate_deconv_forward.2} parent=11 // pred_check_branch
          %126 = sbr.rel (%p124) target = $region16
        $region15: #{gate_deconv_forward.2} parent=11 // pred_region
          _
        $region16: #{gate_deconv_forward.2} parent=11 // pred_fallthru
          _
      $region12: #{gate_deconv_forward.2} parent=5 // pred_fallthru
        _
      %p127 = scmp.lt.s32.totalorder %s10, 2
      // Predicated region
      $region17: #{gate_deconv_forward.2} parent=5 // pred_check
        %p128 = pneg %p127
      $region18: #{gate_deconv_forward.2} parent=5 // pred_check_branch
        %130 = sbr.rel (%p128) target = $region20
      $region19: #{gate_deconv_forward.2} parent=5 // pred_region
        // Predicated region
        $region21: #{gate_deconv_forward.2} parent=19 // pred_check
          %p131 = pneg %p30
        $region22: #{gate_deconv_forward.2} parent=19 // pred_check_branch
          %133 = sbr.rel (%p131) target = $region24
        $region23: #{gate_deconv_forward.2} parent=19 // pred_region
          %s134 = sand.u32 %s20, 1
          %s135 = sand.u32 %s20, 1
          %s136 = smul.addr %s135, 64
          %s137 = scalar_lea.vmem [#allocation2], %s136
          %s138 = smul.u32 4, %s10
          %s139 = smul.addr %s138, 4
          %s140 = scalar_lea.vmem %s0, %s139
          // Predicated region
          $region25: #{gate_deconv_forward.2} parent=23 // pred_check
            _
          $region26: #{gate_deconv_forward.2} parent=23 // pred_check_branch
            %142 = sbr.rel (0) target = $region28
          $region27: #{gate_deconv_forward.2} parent=23 // pred_region
            // Predicated region
            $region29: #{gate_deconv_forward.2} parent=27 // pred_check
              _
            $region30: #{gate_deconv_forward.2} parent=27 // pred_check_branch
              %144 = sbr.rel (0) target = $region32
            $region31: #{gate_deconv_forward.2} parent=27 // pred_region
              loop: start=0, step=1, limit=1
              $region33: #{gate_deconv_forward.2} parent=31 // loop_pre_header
                _
              $region34: #{gate_deconv_forward.2} parent=31 // loop_header
                %s146 = sphi 0, %s150
                %p147 = scmp.ge.s32.totalorder %s146, 1
                %s151 = sphi %s140, %s140
                %s152 = sphi %s137, %s137
              $region35: #{gate_deconv_forward.2} parent=31 // loop_header_branch
                %149 = sbr.rel (%p147) target = $region39
              $region36: #{gate_deconv_forward.2} parent=31 // loop_body
                %v153 = vld [vmem:[%s151] sm:$0xff]
                %154 = vst [vmem:[%s152] sm:$0xff] %v153
                %v155 = vld [vmem:[%s151 + $0x8] sm:$0xff]
                %156 = vst [vmem:[%s152 + $0x8] sm:$0xff] %v155
                %v157 = vld [vmem:[%s151 + $0x20] sm:$0xff]
                %158 = vst [vmem:[%s152 + $0x10] sm:$0xff] %v157
                %v159 = vld [vmem:[%s151 + $0x28] sm:$0xff]
                %160 = vst [vmem:[%s152 + $0x18] sm:$0xff] %v159
                %v161 = vld [vmem:[%s151 + $0x40] sm:$0xff]
                %162 = vst [vmem:[%s152 + $0x20] sm:$0xff] %v161
                %v163 = vld [vmem:[%s151 + $0x48] sm:$0xff]
                %164 = vst [vmem:[%s152 + $0x28] sm:$0xff] %v163
                %v165 = vld [vmem:[%s151 + $0x60] sm:$0xff]
                %166 = vst [vmem:[%s152 + $0x30] sm:$0xff] %v165
                %v167 = vld [vmem:[%s151 + $0x68] sm:$0xff]
                %168 = vst [vmem:[%s152 + $0x38] sm:$0xff] %v167
              $region37: #{gate_deconv_forward.2} parent=31 // loop_footer
                %s150 = sadd.s32 1, %s146
              $region38: #{gate_deconv_forward.2} parent=31 // loop_footer_branch
                %145 = sbr.rel target = $region34
              $region39: #{gate_deconv_forward.2} parent=31 // loop_exit
                _
            $region32: #{gate_deconv_forward.2} parent=27 // pred_fallthru
              _
            // Predicated region
            $region40: #{gate_deconv_forward.2} parent=27 // pred_check
              _
            $region41: #{gate_deconv_forward.2} parent=27 // pred_check_branch
              %170 = sbr.rel target = $region43
            $region42: #{gate_deconv_forward.2} parent=27 // pred_region
              _
            $region43: #{gate_deconv_forward.2} parent=27 // pred_fallthru
              _
          $region28: #{gate_deconv_forward.2} parent=23 // pred_fallthru
            _
          %171 = vnop
        $region24: #{gate_deconv_forward.2} parent=19 // pred_fallthru
          _
      $region20: #{gate_deconv_forward.2} parent=5 // pred_fallthru
        _
      %p172 = scmp.le.s32.totalorder 1, %s10
      %p173 = scmp.lt.s32.totalorder %s10, 3
      %p174 = pnand %p172, %p173
      %p175 = pneg %p174
      // Predicated region
      $region44: #{gate_deconv_forward.2} parent=5 // pred_check
        _
      $region45: #{gate_deconv_forward.2} parent=5 // pred_check_branch
        %177 = sbr.rel (%p174) target = $region47
      $region46: #{gate_deconv_forward.2} parent=5 // pred_region
        %s178 = ssub.s32 %s10, 1
        %s179 = sand.u32 %s23, 1
        %s180 = sand.u32 %s23, 1
        %s181 = smul.addr %s180, 64
        %s182 = scalar_lea.vmem [#allocation2], %s181
        // Predicated region
        $region48: #{gate_deconv_forward.2} parent=46 // pred_check
          %p183 = pneg %p36
        $region49: #{gate_deconv_forward.2} parent=46 // pred_check_branch
          %185 = sbr.rel (%p183) target = $region51
        $region50: #{gate_deconv_forward.2} parent=46 // pred_region
          _
        $region51: #{gate_deconv_forward.2} parent=46 // pred_fallthru
          _
        %s186 = sand.u32 %s23, 1
        %s187 = sand.u32 %s23, 1
        %s188 = smul.addr %s187, 64
        %s189 = scalar_lea.vmem [#allocation2], %s188
        %p190 = pneg %p36
        %p191 = pneg %p33
        %p192 = pneg %p57
        %p193 = pneg %p54
        %p194 = pneg %p83
        %p195 = pneg %p80
        %p196 = scmp.lt.s32.totalorder %s15, 1
        %s197 = scalar_select %p196, %s15, 1
        %s198 = smul.addr %s197, 8
        %s199 = smul.addr %s198, 8
        %s200 = scalar_lea.vmem %s2, %s199
        %p201 = pneg %p109
        %p202 = pneg %p106
        %p203 = scmp.lt.s32.totalorder %s15, 1
        %s204 = scalar_select %p203, %s15, 1
        %s205 = smul.addr %s204, 8
        %s206 = smul.addr %s205, 8
        %s207 = scalar_lea.vmem %s3, %s206
        %s208 = smul.u32 4, %s15
        %p209 = scmp.lt.s32.totalorder %s15, 1
        %s210 = scalar_select %p209, %s15, 1
        %s211 = smul.addr %s210, 8
        %s212 = smul.addr %s211, 8
        %s213 = scalar_lea.vmem %s2, %s212
        %p214 = scmp.lt.s32.totalorder %s15, 1
        %s215 = scalar_select %p214, %s15, 1
        %s216 = smul.addr %s215, 8
        %s217 = smul.addr %s216, 8
        %s218 = scalar_lea.vmem %s3, %s217
        %v220 = vld [vmem:[%s1] sm:$0xf]
        %v221 = vld [vmem:[%s1 + $0x4] sm:$0xf]
        %v222 = vld [vmem:[%s1 + $0x8] sm:$0xf]
        %v223 = vld [vmem:[%s1 + $0xc] sm:$0xf]
        %v224 = vld [vmem:[%s1 + $0x10] sm:$0xf]
        %v225 = vld [vmem:[%s1 + $0x14] sm:$0xf]
        %v226 = vld [vmem:[%s1 + $0x18] sm:$0xf]
        %v227 = vld [vmem:[%s1 + $0x1c] sm:$0xf]
        %v228 = vld [vmem:[%s182] sm:$0xff]
        %v229 = vld [vmem:[%s182 + $0x8] sm:$0xff]
        %v230 = vld [vmem:[%s182 + $0x10] sm:$0xff]
        %v231 = vld [vmem:[%s182 + $0x18] sm:$0xff]
        %v232 = vld [vmem:[%s182 + $0x20] sm:$0xff]
        %v233 = vld [vmem:[%s182 + $0x28] sm:$0xff]
        %v234 = vld [vmem:[%s182 + $0x30] sm:$0xff]
        %v235 = vld [vmem:[%s182 + $0x38] sm:$0xff]
        %v244 = vunpack.c.l.b16 %v220
        %v245 = vunpack.c.l.b16 %v221
        %v246 = vunpack.c.l.b16 %v222
        %v247 = vunpack.c.l.b16 %v223
        %v248 = vunpack.c.l.b16 %v224
        %v249 = vunpack.c.l.b16 %v225
        %v250 = vunpack.c.l.b16 %v226
        %v251 = vunpack.c.l.b16 %v227
        %v252 = vpack.c.b16 %v245, %v244
        %v253 = vpack.c.b16 %v247, %v246
        %v254 = vpack.c.b16 %v249, %v248
        %v255 = vpack.c.b16 %v251, %v250
        %v264 = vunpack.c.l.b16 %v228
        %v265 = vunpack.c.h.b16 %v228
        %v266 = vunpack.c.l.b16 %v229
        %v267 = vunpack.c.h.b16 %v229
        %v268 = vunpack.c.l.b16 %v230
        %v269 = vunpack.c.h.b16 %v230
        %v270 = vunpack.c.l.b16 %v231
        %v271 = vunpack.c.h.b16 %v231
        %v272 = vunpack.c.l.b16 %v232
        %v273 = vunpack.c.h.b16 %v232
        %v274 = vunpack.c.l.b16 %v233
        %v275 = vunpack.c.h.b16 %v233
        %v276 = vunpack.c.l.b16 %v234
        %v277 = vunpack.c.h.b16 %v234
        %v278 = vunpack.c.l.b16 %v235
        %v279 = vunpack.c.h.b16 %v235
        %v280 = vpack.c.b16 %v268, %v264
        %v281 = vpack.c.b16 %v269, %v265
        %v282 = vpack.c.b16 %v270, %v266
        %v283 = vpack.c.b16 %v271, %v267
        %v284 = vpack.c.b16 %v276, %v272
        %v285 = vpack.c.b16 %v277, %v273
        %v286 = vpack.c.b16 %v278, %v274
        %v287 = vpack.c.b16 %v279, %v275
        %vm296 = vcmask 261120
        %v298 = vsel %vm296, %v252, 0
        %v301 = vsel %vm296, %v253, 0
        %v304 = vsel %vm296, %v254, 0
        %v307 = vsel %vm296, %v255, 0
        %309 = vmatprep.subr.bf16.mxu0 0
        %310 = vmatpush1.bf16.msra.mxu0 0
        %311 = vmatprep.subr.bf16.mxu0 0
        %312 = vmatpush1.bf16.msra.mxu0 0
        %313 = vmatprep.subr.bf16.mxu0 0
        %314 = vmatpush1.bf16.msra.mxu0 0
        %315 = vmatprep.subr.bf16.mxu0 0
        %316 = vmatpush1.bf16.msra.mxu0 0
        %317 = vmatprep.subr.bf16.mxu0 0
        %318 = vmatpush1.bf16.msra.mxu0 0
        %319 = vmatprep.subr.bf16.mxu0 0
        %320 = vmatpush1.bf16.msra.mxu0 0
        %321 = vmatprep.subr.bf16.mxu0 %v285
        %322 = vmatpush1.bf16.msra.mxu0 %v284
        %323 = vmatprep.subr.bf16.mxu0 %v281
        %324 = vmatpush1.bf16.msra.mxu0 %v280
        %325 = vmatprep.subr.bf16.mxu0 0
        %326 = vmatpush2.bf16.msra.mxu0 0
        %327 = vmatprep.subr.bf16.mxu0 0
        %328 = vmatpush2.bf16.msra.mxu0 0
        %329 = vmatprep.subr.bf16.mxu0 0
        %330 = vmatpush2.bf16.msra.mxu0 0
        %331 = vmatprep.subr.bf16.mxu0 0
        %332 = vmatpush2.bf16.msra.mxu0 0
        %333 = vmatprep.subr.bf16.mxu0 0
        %334 = vmatpush2.bf16.msra.mxu0 0
        %335 = vmatprep.subr.bf16.mxu0 0
        %336 = vmatpush2.bf16.msra.mxu0 0
        %337 = vmatprep.subr.bf16.mxu0 0
        %338 = vmatpush2.bf16.msra.mxu0 0
        %339 = vmatprep.subr.bf16.mxu0 0
        %340 = vmatpush2.bf16.msra.mxu0 0
        %341 = vmatprep.mubr.bf16.mxu0 0
        %342 = vmatmul.mubr.bf16.gmra.mxu0 %v298
        %v343 = vpop.f32.mrf.mxu0
        %v344 = vadd.f32 0.0, %v343
        %v345 = vpop.f32.mrf.mxu0
        %v346 = vadd.f32 0.0, %v345
        %v347 = vpop.f32.mrf.mxu0
        %v348 = vadd.f32 0.0, %v347
        %v349 = vpop.f32.mrf.mxu0
        %v350 = vadd.f32 0.0, %v349
        %351 = vmatprep.mubr.bf16.mxu0 0
        %352 = vmatmul.mubr.bf16.gmra.mxu0 %v301
        %v353 = vpop.f32.mrf.mxu0
        %v354 = vadd.f32 0.0, %v353
        %v355 = vpop.f32.mrf.mxu0
        %v356 = vadd.f32 0.0, %v355
        %v357 = vpop.f32.mrf.mxu0
        %v358 = vadd.f32 0.0, %v357
        %v359 = vpop.f32.mrf.mxu0
        %v360 = vadd.f32 0.0, %v359
        %361 = vmatprep.mubr.bf16.mxu0 0
        %362 = vmatmul.mubr.bf16.gmra.mxu0 %v304
        %v363 = vpop.f32.mrf.mxu0
        %v364 = vadd.f32 0.0, %v363
        %v365 = vpop.f32.mrf.mxu0
        %v366 = vadd.f32 0.0, %v365
        %v367 = vpop.f32.mrf.mxu0
        %v368 = vadd.f32 0.0, %v367
        %v369 = vpop.f32.mrf.mxu0
        %v370 = vadd.f32 0.0, %v369
        %371 = vmatprep.mubr.bf16.mxu0 0
        %372 = vmatmul.mubr.bf16.gmra.mxu0 %v307
        %v373 = vpop.f32.mrf.mxu0
        %v374 = vadd.f32 0.0, %v373
        %v375 = vpop.f32.mrf.mxu0
        %v376 = vadd.f32 0.0, %v375
        %v377 = vpop.f32.mrf.mxu0
        %v378 = vadd.f32 0.0, %v377
        %v379 = vpop.f32.mrf.mxu0
        %v380 = vadd.f32 0.0, %v379
        %381 = vdwg.mxu0
        %382 = vmatprep.subr.bf16.mxu0 0
        %383 = vmatpush1.bf16.msra.mxu0 0
        %384 = vmatprep.subr.bf16.mxu0 0
        %385 = vmatpush1.bf16.msra.mxu0 0
        %386 = vmatprep.subr.bf16.mxu0 0
        %387 = vmatpush1.bf16.msra.mxu0 0
        %388 = vmatprep.subr.bf16.mxu0 0
        %389 = vmatpush1.bf16.msra.mxu0 0
        %390 = vmatprep.subr.bf16.mxu0 0
        %391 = vmatpush1.bf16.msra.mxu0 0
        %392 = vmatprep.subr.bf16.mxu0 0
        %393 = vmatpush1.bf16.msra.mxu0 0
        %394 = vmatprep.subr.bf16.mxu0 %v287
        %395 = vmatpush1.bf16.msra.mxu0 %v286
        %396 = vmatprep.subr.bf16.mxu0 %v283
        %397 = vmatpush1.bf16.msra.mxu0 %v282
        %398 = vmatprep.subr.bf16.mxu0 0
        %399 = vmatpush2.bf16.msra.mxu0 0
        %400 = vmatprep.subr.bf16.mxu0 0
        %401 = vmatpush2.bf16.msra.mxu0 0
        %402 = vmatprep.subr.bf16.mxu0 0
        %403 = vmatpush2.bf16.msra.mxu0 0
        %404 = vmatprep.subr.bf16.mxu0 0
        %405 = vmatpush2.bf16.msra.mxu0 0
        %406 = vmatprep.subr.bf16.mxu0 0
        %407 = vmatpush2.bf16.msra.mxu0 0
        %408 = vmatprep.subr.bf16.mxu0 0
        %409 = vmatpush2.bf16.msra.mxu0 0
        %410 = vmatprep.subr.bf16.mxu0 0
        %411 = vmatpush2.bf16.msra.mxu0 0
        %412 = vmatprep.subr.bf16.mxu0 0
        %413 = vmatpush2.bf16.msra.mxu0 0
        %414 = vmatprep.mubr.bf16.mxu0 0
        %415 = vmatmul.mubr.bf16.gmra.mxu0 %v298
        %v416 = vpop.f32.mrf.mxu0
        %v417 = vadd.f32 0.0, %v416
        %v418 = vpop.f32.mrf.mxu0
        %v419 = vadd.f32 0.0, %v418
        %v420 = vpop.f32.mrf.mxu0
        %v421 = vadd.f32 0.0, %v420
        %v422 = vpop.f32.mrf.mxu0
        %v423 = vadd.f32 0.0, %v422
        %424 = vmatprep.mubr.bf16.mxu0 0
        %425 = vmatmul.mubr.bf16.gmra.mxu0 %v301
        %v426 = vpop.f32.mrf.mxu0
        %v427 = vadd.f32 0.0, %v426
        %v428 = vpop.f32.mrf.mxu0
        %v429 = vadd.f32 0.0, %v428
        %v430 = vpop.f32.mrf.mxu0
        %v431 = vadd.f32 0.0, %v430
        %v432 = vpop.f32.mrf.mxu0
        %v433 = vadd.f32 0.0, %v432
        %434 = vmatprep.mubr.bf16.mxu0 0
        %435 = vmatmul.mubr.bf16.gmra.mxu0 %v304
        %v436 = vpop.f32.mrf.mxu0
        %v437 = vadd.f32 0.0, %v436
        %v438 = vpop.f32.mrf.mxu0
        %v439 = vadd.f32 0.0, %v438
        %v440 = vpop.f32.mrf.mxu0
        %v441 = vadd.f32 0.0, %v440
        %v442 = vpop.f32.mrf.mxu0
        %v443 = vadd.f32 0.0, %v442
        %444 = vmatprep.mubr.bf16.mxu0 0
        %445 = vmatmul.mubr.bf16.gmra.mxu0 %v307
        %v446 = vpop.f32.mrf.mxu0
        %v447 = vadd.f32 0.0, %v446
        %v448 = vpop.f32.mrf.mxu0
        %v449 = vadd.f32 0.0, %v448
        %v450 = vpop.f32.mrf.mxu0
        %v451 = vadd.f32 0.0, %v450
        %v452 = vpop.f32.mrf.mxu0
        %v453 = vadd.f32 0.0, %v452
        %454 = vdwg.mxu0
        %v455 = vadd.f32 %v344, %v346
        %v456 = vadd.f32 %v455, %v417
        %v457 = vadd.f32 %v456, %v419
        %458 = vadd.xlane.f32.xlu0 %v457
        %v459 = vpop.xlane.xlu0 %458
        %v460 = vadd.f32 %v348, %v350
        %v461 = vadd.f32 %v460, %v421
        %v462 = vadd.f32 %v461, %v423
        %463 = vadd.xlane.f32.xlu0 %v462
        %v464 = vpop.xlane.xlu0 %463
        %v465 = vadd.f32 %v354, %v356
        %v466 = vadd.f32 %v465, %v427
        %v467 = vadd.f32 %v466, %v429
        %468 = vadd.xlane.f32.xlu0 %v467
        %v469 = vpop.xlane.xlu0 %468
        %v470 = vadd.f32 %v358, %v360
        %v471 = vadd.f32 %v470, %v431
        %v472 = vadd.f32 %v471, %v433
        %473 = vadd.xlane.f32.xlu0 %v472
        %v474 = vpop.xlane.xlu0 %473
        %v475 = vadd.f32 %v364, %v366
        %v476 = vadd.f32 %v475, %v437
        %v477 = vadd.f32 %v476, %v439
        %478 = vadd.xlane.f32.xlu0 %v477
        %v479 = vpop.xlane.xlu0 %478
        %v480 = vadd.f32 %v368, %v370
        %v481 = vadd.f32 %v480, %v441
        %v482 = vadd.f32 %v481, %v443
        %483 = vadd.xlane.f32.xlu0 %v482
        %v484 = vpop.xlane.xlu0 %483
        %v485 = vadd.f32 %v374, %v376
        %v486 = vadd.f32 %v485, %v447
        %v487 = vadd.f32 %v486, %v449
        %488 = vadd.xlane.f32.xlu0 %v487
        %v489 = vpop.xlane.xlu0 %488
        %v490 = vadd.f32 %v378, %v380
        %v491 = vadd.f32 %v490, %v451
        %v492 = vadd.f32 %v491, %v453
        %493 = vadd.xlane.f32.xlu0 %v492
        %v494 = vpop.xlane.xlu0 %493
        %v495 = vmul.f32 %v459, 0.001953125
        %v496 = vmul.f32 %v464, 0.001953125
        %v497 = vmul.f32 %v469, 0.001953125
        %v498 = vmul.f32 %v474, 0.001953125
        %v499 = vmul.f32 %v479, 0.001953125
        %v500 = vmul.f32 %v484, 0.001953125
        %v501 = vmul.f32 %v489, 0.001953125
        %v502 = vmul.f32 %v494, 0.001953125
        %v503 = vsub.f32 %v344, %v495
        %v504 = vsub.f32 %v346, %v495
        %v505 = vsub.f32 %v417, %v495
        %v506 = vsub.f32 %v419, %v495
        %v507 = vsub.f32 %v348, %v496
        %v508 = vsub.f32 %v350, %v496
        %v509 = vsub.f32 %v421, %v496
        %v510 = vsub.f32 %v423, %v496
        %v511 = vsub.f32 %v354, %v497
        %v512 = vsub.f32 %v356, %v497
        %v513 = vsub.f32 %v427, %v497
        %v514 = vsub.f32 %v429, %v497
        %v515 = vsub.f32 %v358, %v498
        %v516 = vsub.f32 %v360, %v498
        %v517 = vsub.f32 %v431, %v498
        %v518 = vsub.f32 %v433, %v498
        %v519 = vsub.f32 %v364, %v499
        %v520 = vsub.f32 %v366, %v499
        %v521 = vsub.f32 %v437, %v499
        %v522 = vsub.f32 %v439, %v499
        %v523 = vsub.f32 %v368, %v500
        %v524 = vsub.f32 %v370, %v500
        %v525 = vsub.f32 %v441, %v500
        %v526 = vsub.f32 %v443, %v500
        %v527 = vsub.f32 %v374, %v501
        %v528 = vsub.f32 %v376, %v501
        %v529 = vsub.f32 %v447, %v501
        %v530 = vsub.f32 %v449, %v501
        %v531 = vsub.f32 %v378, %v502
        %v532 = vsub.f32 %v380, %v502
        %v533 = vsub.f32 %v451, %v502
        %v534 = vsub.f32 %v453, %v502
        %v535 = vmul.f32 %v503, %v503
        %v536 = vmul.f32 %v504, %v504
        %v537 = vmul.f32 %v505, %v505
        %v538 = vmul.f32 %v506, %v506
        %v539 = vmul.f32 %v507, %v507
        %v540 = vmul.f32 %v508, %v508
        %v541 = vmul.f32 %v509, %v509
        %v542 = vmul.f32 %v510, %v510
        %v543 = vmul.f32 %v511, %v511
        %v544 = vmul.f32 %v512, %v512
        %v545 = vmul.f32 %v513, %v513
        %v546 = vmul.f32 %v514, %v514
        %v547 = vmul.f32 %v515, %v515
        %v548 = vmul.f32 %v516, %v516
        %v549 = vmul.f32 %v517, %v517
        %v550 = vmul.f32 %v518, %v518
        %v551 = vmul.f32 %v519, %v519
        %v552 = vmul.f32 %v520, %v520
        %v553 = vmul.f32 %v521, %v521
        %v554 = vmul.f32 %v522, %v522
        %v555 = vmul.f32 %v523, %v523
        %v556 = vmul.f32 %v524, %v524
        %v557 = vmul.f32 %v525, %v525
        %v558 = vmul.f32 %v526, %v526
        %v559 = vmul.f32 %v527, %v527
        %v560 = vmul.f32 %v528, %v528
        %v561 = vmul.f32 %v529, %v529
        %v562 = vmul.f32 %v530, %v530
        %v563 = vmul.f32 %v531, %v531
        %v564 = vmul.f32 %v532, %v532
        %v565 = vmul.f32 %v533, %v533
        %v566 = vmul.f32 %v534, %v534
        %v567 = vadd.f32 %v535, %v536
        %v568 = vadd.f32 %v567, %v537
        %v569 = vadd.f32 %v568, %v538
        %570 = vadd.xlane.f32.xlu0 %v569
        %v571 = vpop.xlane.xlu0 %570
        %v572 = vadd.f32 %v539, %v540
        %v573 = vadd.f32 %v572, %v541
        %v574 = vadd.f32 %v573, %v542
        %575 = vadd.xlane.f32.xlu0 %v574
        %v576 = vpop.xlane.xlu0 %575
        %v577 = vadd.f32 %v543, %v544
        %v578 = vadd.f32 %v577, %v545
        %v579 = vadd.f32 %v578, %v546
        %580 = vadd.xlane.f32.xlu0 %v579
        %v581 = vpop.xlane.xlu0 %580
        %v582 = vadd.f32 %v547, %v548
        %v583 = vadd.f32 %v582, %v549
        %v584 = vadd.f32 %v583, %v550
        %585 = vadd.xlane.f32.xlu0 %v584
        %v586 = vpop.xlane.xlu0 %585
        %v587 = vadd.f32 %v551, %v552
        %v588 = vadd.f32 %v587, %v553
        %v589 = vadd.f32 %v588, %v554
        %590 = vadd.xlane.f32.xlu0 %v589
        %v591 = vpop.xlane.xlu0 %590
        %v592 = vadd.f32 %v555, %v556
        %v593 = vadd.f32 %v592, %v557
        %v594 = vadd.f32 %v593, %v558
        %595 = vadd.xlane.f32.xlu0 %v594
        %v596 = vpop.xlane.xlu0 %595
        %v597 = vadd.f32 %v559, %v560
        %v598 = vadd.f32 %v597, %v561
        %v599 = vadd.f32 %v598, %v562
        %600 = vadd.xlane.f32.xlu0 %v599
        %v601 = vpop.xlane.xlu0 %600
        %v602 = vadd.f32 %v563, %v564
        %v603 = vadd.f32 %v602, %v565
        %v604 = vadd.f32 %v603, %v566
        %605 = vadd.xlane.f32.xlu0 %v604
        %v606 = vpop.xlane.xlu0 %605
        %vm607 = vcmask 7168
        %608 = vst.msk [vmem:[%s213] sm:$0xff] %vm607, %v459
        %609 = vst.msk [vmem:[%s213 + $0x8] sm:$0xff] %vm607, %v464
        %610 = vst.msk [vmem:[%s213 + $0x10] sm:$0xff] %vm607, %v469
        %611 = vst.msk [vmem:[%s213 + $0x18] sm:$0xff] %vm607, %v474
        %612 = vst.msk [vmem:[%s213 + $0x20] sm:$0xff] %vm607, %v479
        %613 = vst.msk [vmem:[%s213 + $0x28] sm:$0xff] %vm607, %v484
        %614 = vst.msk [vmem:[%s213 + $0x30] sm:$0xff] %vm607, %v489
        %615 = vst.msk [vmem:[%s213 + $0x38] sm:$0xff] %vm607, %v494
        %616 = vst.msk [vmem:[%s218] sm:$0xff] %vm607, %v571
        %617 = vst.msk [vmem:[%s218 + $0x8] sm:$0xff] %vm607, %v576
        %618 = vst.msk [vmem:[%s218 + $0x10] sm:$0xff] %vm607, %v581
        %619 = vst.msk [vmem:[%s218 + $0x18] sm:$0xff] %vm607, %v586
        %620 = vst.msk [vmem:[%s218 + $0x20] sm:$0xff] %vm607, %v591
        %621 = vst.msk [vmem:[%s218 + $0x28] sm:$0xff] %vm607, %v596
        %622 = vst.msk [vmem:[%s218 + $0x30] sm:$0xff] %vm607, %v601
        %623 = vst.msk [vmem:[%s218 + $0x38] sm:$0xff] %vm607, %v606
        %p624 = scmp.lt.s32.totalorder %s15, 1
        %s625 = scalar_select %p624, %s15, 1
        %s626 = smul.addr %s625, 8
        %s627 = smul.addr %s626, 8
        %s628 = scalar_lea.vmem %s2, %s627
        %p629 = scmp.lt.s32.totalorder %s15, 1
        %s630 = scalar_select %p629, %s15, 1
        %s631 = smul.addr %s630, 8
        %s632 = smul.addr %s631, 8
        %s633 = scalar_lea.vmem %s3, %s632
        // Predicated region
        $region52: #{gate_deconv_forward.2} parent=46 // pred_check
          %p634 = pneg %p80
        $region53: #{gate_deconv_forward.2} parent=46 // pred_check_branch
          %636 = sbr.rel (%p634) target = $region55
        $region54: #{gate_deconv_forward.2} parent=46 // pred_region
          _
        $region55: #{gate_deconv_forward.2} parent=46 // pred_fallthru
          _
        // Predicated region
        $region56: #{gate_deconv_forward.2} parent=46 // pred_check
          %p637 = pneg %p106
        $region57: #{gate_deconv_forward.2} parent=46 // pred_check_branch
          %639 = sbr.rel (%p637) target = $region59
        $region58: #{gate_deconv_forward.2} parent=46 // pred_region
          _
        $region59: #{gate_deconv_forward.2} parent=46 // pred_fallthru
          _
      $region47: #{gate_deconv_forward.2} parent=5 // pred_fallthru
        _
      %p640 = scmp.le.s32.totalorder 2, %s10
      // Predicated region
      $region60: #{gate_deconv_forward.2} parent=5 // pred_check
        %p641 = pneg %p640
      $region61: #{gate_deconv_forward.2} parent=5 // pred_check_branch
        %643 = sbr.rel (%p641) target = $region63
      $region62: #{gate_deconv_forward.2} parent=5 // pred_region
        %s644 = ssub.s32 %s10, 2
        // Predicated region
        $region64: #{gate_deconv_forward.2} parent=62 // pred_check
          %p645 = pneg %p86
        $region65: #{gate_deconv_forward.2} parent=62 // pred_check_branch
          %647 = sbr.rel (%p645) target = $region67
        $region66: #{gate_deconv_forward.2} parent=62 // pred_region
          %p648 = scmp.lt.s32.totalorder %s16, 1
          %s649 = scalar_select %p648, %s16, 1
          %s650 = smul.addr %s649, 8
          %s651 = smul.addr %s650, 8
          %s652 = scalar_lea.vmem %s2, %s651
        $region67: #{gate_deconv_forward.2} parent=62 // pred_fallthru
          _
        // Predicated region
        $region68: #{gate_deconv_forward.2} parent=62 // pred_check
          %p653 = pneg %p112
        $region69: #{gate_deconv_forward.2} parent=62 // pred_check_branch
          %655 = sbr.rel (%p653) target = $region71
        $region70: #{gate_deconv_forward.2} parent=62 // pred_region
          %p656 = scmp.lt.s32.totalorder %s16, 1
          %s657 = scalar_select %p656, %s16, 1
          %s658 = smul.addr %s657, 8
          %s659 = smul.addr %s658, 8
          %s660 = scalar_lea.vmem %s3, %s659
        $region71: #{gate_deconv_forward.2} parent=62 // pred_fallthru
          _
      $region63: #{gate_deconv_forward.2} parent=5 // pred_fallthru
        _
    $region6: #{gate_deconv_forward.2} parent=1 // loop_footer
      %s14 = sadd.s32 1, %s10
    $region7: #{gate_deconv_forward.2} parent=1 // loop_footer_branch
      %9 = sbr.rel target = $region3
    $region8: #{gate_deconv_forward.2} parent=1 // loop_exit
      _

// kernel: gate_deconv_forward.3
$region0: #{gate_deconv_forward.3}
  #allocation0 [shape = 'u32[]', space=smem, size = 0x4, offset = 0x4, fixed_abs, tag = 'smem constant byte address 0x4 - core index']
  #allocation1 [shape = 'u32[144,128]{1,0:T(1,128)}', space=vmem, size = 0x12000, scoped, tag = 'internal scratch']
  %s0 = inlined_call_operand.vmem [shape: bf16[32,1024], index: 0, kind: input, shape index: {}]
  %s1 = inlined_call_operand.vmem [shape: bf16[64,32], index: 1, kind: input, shape index: {}]
  %s2 = inlined_call_operand.vmem [shape: f32[64,1], index: 2, kind: input, shape index: {}]
  %s3 = inlined_call_operand.vmem [shape: f32[64,1], index: 3, kind: input, shape index: {}]
  %s4 = inlined_call_operand.vmem [shape: bf16[64,1024], index: 4, kind: output, shape index: {}]
  %s5 = sld [smem:[#allocation0]]
  $region91: #{gate_deconv_forward.3} parent=0
    _
  %s7 = ssub.s32 1, %s5
  %s8 = scalar_select 0, %s7, %s5
  $region1: #{gate_deconv_forward.3} parent=0
    #allocation2 [shape = 'u8[65536]{0}', space=vmem, size = 0x10000, scoped, tag = 'input window, operand 0']
    #allocation3 [shape = 'u8[131072]{0}', space=vmem, size = 0x20000, scoped, tag = 'output window, operand 0']
    loop: start=0, step=1, limit=4
    $region2: #{gate_deconv_forward.3} parent=1 // loop_pre_header
      _
    $region3: #{gate_deconv_forward.3} parent=1 // loop_header
      %s10 = sphi 0, %s14
      %p11 = scmp.ge.s32.totalorder %s10, 4
      %s20 = sphi 0, %s22
      %s23 = sphi 0, %s20
      %s24 = sphi 0, %s23
      %s40 = sphi 0, %s24
      %s44 = sphi 0, %s44
      %s46 = sphi 0, %s44
      %s47 = sphi 0, %s46
      %s61 = sphi 0, %s47
      %s65 = sphi 0, %s65
      %s67 = sphi 0, %s65
      %s68 = sphi 0, %s67
      %s82 = sphi 0, %s68
      %s86 = sphi 0, %s86
      %s88 = sphi 0, %s86
      %s89 = sphi 0, %s88
      %s103 = sphi 0, %s89
      %s109 = sphi 0, %s111
      %s112 = sphi 0, %s109
      %s113 = sphi 0, %s112
      %s129 = sphi 0, %s113
    $region4: #{gate_deconv_forward.3} parent=1 // loop_header_branch
      %13 = sbr.rel (%p11) target = $region8
    $region5: #{gate_deconv_forward.3} parent=1 // loop_body
      %s15 = ssub.s32 %s10, 1
      %s16 = ssub.s32 %s10, 2
      %s17 = sadd.s32 %s10, 1
      %s18 = ssub.s32 %s10, %s17
      %p19 = scmp.eq.s32.totalorder %s18, 0
      %s21 = sadd.s32 %s20, 1
      %s22 = scalar_select %p19, %s20, %s21
      %p25 = pneg %p19
      %p26 = scmp.eq.s32.totalorder %s10, 1
      %p27 = por %p25, %p26
      %p28 = scmp.ne.s32.totalorder %s20, %s23
      %p29 = scmp.eq.s32.totalorder %s10, 0
      %p30 = por %p28, %p29
      %p31 = scmp.ne.s32.totalorder %s20, %s23
      %p32 = scmp.eq.s32.totalorder %s15, 1
      %p33 = por %p31, %p32
      %p34 = scmp.ne.s32.totalorder %s23, %s24
      %p35 = scmp.eq.s32.totalorder %s15, 0
      %p36 = por %p34, %p35
      %p37 = scmp.ne.s32.totalorder %s23, %s24
      %p38 = scmp.eq.s32.totalorder %s16, 1
      %p39 = por %p37, %p38
      %p41 = scmp.ne.s32.totalorder %s24, %s40
      %p42 = scmp.eq.s32.totalorder %s16, 0
      %p43 = por %p41, %p42
      %s45 = sadd.s32 %s44, 1
      %p48 = scmp.eq.s32.totalorder %s10, 1
      %p49 = scmp.ne.s32.totalorder %s44, %s46
      %p50 = scmp.eq.s32.totalorder %s10, 0
      %p51 = por %p49, %p50
      %p52 = scmp.ne.s32.totalorder %s44, %s46
      %p53 = scmp.eq.s32.totalorder %s15, 1
      %p54 = por %p52, %p53
      %p55 = scmp.ne.s32.totalorder %s46, %s47
      %p56 = scmp.eq.s32.totalorder %s15, 0
      %p57 = por %p55, %p56
      %p58 = scmp.ne.s32.totalorder %s46, %s47
      %p59 = scmp.eq.s32.totalorder %s16, 1
      %p60 = por %p58, %p59
      %p62 = scmp.ne.s32.totalorder %s47, %s61
      %p63 = scmp.eq.s32.totalorder %s16, 0
      %p64 = por %p62, %p63
      %s66 = sadd.s32 %s65, 1
      %p69 = scmp.eq.s32.totalorder %s10, 1
      %p70 = scmp.ne.s32.totalorder %s65, %s67
      %p71 = scmp.eq.s32.totalorder %s10, 0
      %p72 = por %p70, %p71
      %p73 = scmp.ne.s32.totalorder %s65, %s67
      %p74 = scmp.eq.s32.totalorder %s15, 1
      %p75 = por %p73, %p74
      %p76 = scmp.ne.s32.totalorder %s67, %s68
      %p77 = scmp.eq.s32.totalorder %s15, 0
      %p78 = por %p76, %p77
      %p79 = scmp.ne.s32.totalorder %s67, %s68
      %p80 = scmp.eq.s32.totalorder %s16, 1
      %p81 = por %p79, %p80
      %p83 = scmp.ne.s32.totalorder %s68, %s82
      %p84 = scmp.eq.s32.totalorder %s16, 0
      %p85 = por %p83, %p84
      %s87 = sadd.s32 %s86, 1
      %p90 = scmp.eq.s32.totalorder %s10, 1
      %p91 = scmp.ne.s32.totalorder %s86, %s88
      %p92 = scmp.eq.s32.totalorder %s10, 0
      %p93 = por %p91, %p92
      %p94 = scmp.ne.s32.totalorder %s86, %s88
      %p95 = scmp.eq.s32.totalorder %s15, 1
      %p96 = por %p94, %p95
      %p97 = scmp.ne.s32.totalorder %s88, %s89
      %p98 = scmp.eq.s32.totalorder %s15, 0
      %p99 = por %p97, %p98
      %p100 = scmp.ne.s32.totalorder %s88, %s89
      %p101 = scmp.eq.s32.totalorder %s16, 1
      %p102 = por %p100, %p101
      %p104 = scmp.ne.s32.totalorder %s89, %s103
      %p105 = scmp.eq.s32.totalorder %s16, 0
      %p106 = por %p104, %p105
      %s107 = ssub.s32 %s10, %s17
      %p108 = scmp.eq.s32.totalorder %s107, 0
      %s110 = sadd.s32 %s109, 1
      %s111 = scalar_select %p108, %s109, %s110
      %p114 = pneg %p108
      %p115 = scmp.eq.s32.totalorder %s10, 1
      %p116 = por %p114, %p115
      %p117 = scmp.ne.s32.totalorder %s109, %s112
      %p118 = scmp.eq.s32.totalorder %s10, 0
      %p119 = por %p117, %p118
      %p120 = scmp.ne.s32.totalorder %s109, %s112
      %p121 = scmp.eq.s32.totalorder %s15, 1
      %p122 = por %p120, %p121
      %p123 = scmp.ne.s32.totalorder %s112, %s113
      %p124 = scmp.eq.s32.totalorder %s15, 0
      %p125 = por %p123, %p124
      %p126 = scmp.ne.s32.totalorder %s112, %s113
      %p127 = scmp.eq.s32.totalorder %s16, 1
      %p128 = por %p126, %p127
      %p130 = scmp.ne.s32.totalorder %s113, %s129
      %p131 = scmp.eq.s32.totalorder %s16, 0
      %p132 = por %p130, %p131
      %p133 = scmp.le.s32.totalorder 1, %s10
      %p134 = scmp.lt.s32.totalorder %s10, 3
      %p135 = pnand %p133, %p134
      %p136 = pneg %p135
      // Predicated region
      $region9: #{gate_deconv_forward.3} parent=5 // pred_check
        _
      $region10: #{gate_deconv_forward.3} parent=5 // pred_check_branch
        %138 = sbr.rel (%p135) target = $region12
      $region11: #{gate_deconv_forward.3} parent=5 // pred_region
        %s139 = ssub.s32 %s10, 1
        // Predicated region
        $region13: #{gate_deconv_forward.3} parent=11 // pred_check
          %p140 = pneg %p57
        $region14: #{gate_deconv_forward.3} parent=11 // pred_check_branch
          %142 = sbr.rel (%p140) target = $region16
        $region15: #{gate_deconv_forward.3} parent=11 // pred_region
          _
        $region16: #{gate_deconv_forward.3} parent=11 // pred_fallthru
          _
        // Predicated region
        $region17: #{gate_deconv_forward.3} parent=11 // pred_check
          %p143 = pneg %p78
        $region18: #{gate_deconv_forward.3} parent=11 // pred_check_branch
          %145 = sbr.rel (%p143) target = $region20
        $region19: #{gate_deconv_forward.3} parent=11 // pred_region
          _
        $region20: #{gate_deconv_forward.3} parent=11 // pred_fallthru
          _
        // Predicated region
        $region21: #{gate_deconv_forward.3} parent=11 // pred_check
          %p146 = pneg %p99
        $region22: #{gate_deconv_forward.3} parent=11 // pred_check_branch
          %148 = sbr.rel (%p146) target = $region24
        $region23: #{gate_deconv_forward.3} parent=11 // pred_region
          _
        $region24: #{gate_deconv_forward.3} parent=11 // pred_fallthru
          _
      $region12: #{gate_deconv_forward.3} parent=5 // pred_fallthru
        _
      %p149 = scmp.lt.s32.totalorder %s10, 2
      // Predicated region
      $region25: #{gate_deconv_forward.3} parent=5 // pred_check
        %p150 = pneg %p149
      $region26: #{gate_deconv_forward.3} parent=5 // pred_check_branch
        %152 = sbr.rel (%p150) target = $region28
      $region27: #{gate_deconv_forward.3} parent=5 // pred_region
        // Predicated region
        $region29: #{gate_deconv_forward.3} parent=27 // pred_check
          %p153 = pneg %p30
        $region30: #{gate_deconv_forward.3} parent=27 // pred_check_branch
          %155 = sbr.rel (%p153) target = $region32
        $region31: #{gate_deconv_forward.3} parent=27 // pred_region
          %s156 = sand.u32 %s20, 1
          %s157 = sand.u32 %s20, 1
          %s158 = smul.addr %s157, 64
          %s159 = scalar_lea.vmem [#allocation2], %s158
          %s160 = smul.u32 4, %s10
          %s161 = smul.addr %s160, 4
          %s162 = scalar_lea.vmem %s0, %s161
          // Predicated region
          $region33: #{gate_deconv_forward.3} parent=31 // pred_check
            _
          $region34: #{gate_deconv_forward.3} parent=31 // pred_check_branch
            %164 = sbr.rel (0) target = $region36
          $region35: #{gate_deconv_forward.3} parent=31 // pred_region
            // Predicated region
            $region37: #{gate_deconv_forward.3} parent=35 // pred_check
              _
            $region38: #{gate_deconv_forward.3} parent=35 // pred_check_branch
              %166 = sbr.rel (0) target = $region40
            $region39: #{gate_deconv_forward.3} parent=35 // pred_region
              loop: start=0, step=1, limit=1
              $region41: #{gate_deconv_forward.3} parent=39 // loop_pre_header
                _
              $region42: #{gate_deconv_forward.3} parent=39 // loop_header
                %s168 = sphi 0, %s172
                %p169 = scmp.ge.s32.totalorder %s168, 1
                %s173 = sphi %s162, %s162
                %s174 = sphi %s159, %s159
              $region43: #{gate_deconv_forward.3} parent=39 // loop_header_branch
                %171 = sbr.rel (%p169) target = $region47
              $region44: #{gate_deconv_forward.3} parent=39 // loop_body
                %v175 = vld [vmem:[%s173] sm:$0xff]
                %176 = vst [vmem:[%s174] sm:$0xff] %v175
                %v177 = vld [vmem:[%s173 + $0x8] sm:$0xff]
                %178 = vst [vmem:[%s174 + $0x8] sm:$0xff] %v177
                %v179 = vld [vmem:[%s173 + $0x20] sm:$0xff]
                %180 = vst [vmem:[%s174 + $0x10] sm:$0xff] %v179
                %v181 = vld [vmem:[%s173 + $0x28] sm:$0xff]
                %182 = vst [vmem:[%s174 + $0x18] sm:$0xff] %v181
                %v183 = vld [vmem:[%s173 + $0x40] sm:$0xff]
                %184 = vst [vmem:[%s174 + $0x20] sm:$0xff] %v183
                %v185 = vld [vmem:[%s173 + $0x48] sm:$0xff]
                %186 = vst [vmem:[%s174 + $0x28] sm:$0xff] %v185
                %v187 = vld [vmem:[%s173 + $0x60] sm:$0xff]
                %188 = vst [vmem:[%s174 + $0x30] sm:$0xff] %v187
                %v189 = vld [vmem:[%s173 + $0x68] sm:$0xff]
                %190 = vst [vmem:[%s174 + $0x38] sm:$0xff] %v189
              $region45: #{gate_deconv_forward.3} parent=39 // loop_footer
                %s172 = sadd.s32 1, %s168
              $region46: #{gate_deconv_forward.3} parent=39 // loop_footer_branch
                %167 = sbr.rel target = $region42
              $region47: #{gate_deconv_forward.3} parent=39 // loop_exit
                _
            $region40: #{gate_deconv_forward.3} parent=35 // pred_fallthru
              _
            // Predicated region
            $region48: #{gate_deconv_forward.3} parent=35 // pred_check
              _
            $region49: #{gate_deconv_forward.3} parent=35 // pred_check_branch
              %192 = sbr.rel target = $region51
            $region50: #{gate_deconv_forward.3} parent=35 // pred_region
              _
            $region51: #{gate_deconv_forward.3} parent=35 // pred_fallthru
              _
          $region36: #{gate_deconv_forward.3} parent=31 // pred_fallthru
            _
          %193 = vnop
        $region32: #{gate_deconv_forward.3} parent=27 // pred_fallthru
          _
      $region28: #{gate_deconv_forward.3} parent=5 // pred_fallthru
        _
      %p194 = scmp.le.s32.totalorder 1, %s10
      %p195 = scmp.lt.s32.totalorder %s10, 3
      %p196 = pnand %p194, %p195
      %p197 = pneg %p196
      // Predicated region
      $region52: #{gate_deconv_forward.3} parent=5 // pred_check
        _
      $region53: #{gate_deconv_forward.3} parent=5 // pred_check_branch
        %199 = sbr.rel (%p196) target = $region55
      $region54: #{gate_deconv_forward.3} parent=5 // pred_region
        %s200 = ssub.s32 %s10, 1
        %s201 = sand.u32 %s23, 1
        %s202 = sand.u32 %s23, 1
        %s203 = smul.addr %s202, 64
        %s204 = scalar_lea.vmem [#allocation2], %s203
        // Predicated region
        $region56: #{gate_deconv_forward.3} parent=54 // pred_check
          %p205 = pneg %p36
        $region57: #{gate_deconv_forward.3} parent=54 // pred_check_branch
          %207 = sbr.rel (%p205) target = $region59
        $region58: #{gate_deconv_forward.3} parent=54 // pred_region
          _
        $region59: #{gate_deconv_forward.3} parent=54 // pred_fallthru
          _
        %s208 = sand.u32 %s23, 1
        %s209 = sand.u32 %s23, 1
        %s210 = smul.addr %s209, 64
        %s211 = scalar_lea.vmem [#allocation2], %s210
        %p212 = pneg %p36
        %p213 = pneg %p33
        %p214 = pneg %p57
        %p215 = pneg %p54
        %p216 = pneg %p78
        %p217 = pneg %p75
        %p218 = pneg %p99
        %p219 = pneg %p96
        %p220 = pneg %p125
        %p221 = pneg %p122
        %s222 = sand.u32 %s112, 1
        %s223 = sand.u32 %s112, 1
        %s224 = smul.addr %s223, 128
        %s225 = scalar_lea.vmem [#allocation3], %s224
        %s226 = smul.u32 4, %s15
        %s227 = smul.u32 4, %s15
        %v229 = vld [vmem:[%s1] sm:$0xf]
        %v230 = vld [vmem:[%s1 + $0x4] sm:$0xf]
        %v231 = vld [vmem:[%s1 + $0x8] sm:$0xf]
        %v232 = vld [vmem:[%s1 + $0xc] sm:$0xf]
        %v233 = vld [vmem:[%s1 + $0x10] sm:$0xf]
        %v234 = vld [vmem:[%s1 + $0x14] sm:$0xf]
        %v235 = vld [vmem:[%s1 + $0x18] sm:$0xf]
        %v236 = vld [vmem:[%s1 + $0x1c] sm:$0xf]
        %v237 = vld [vmem:[%s204] sm:$0xff]
        %v238 = vld [vmem:[%s204 + $0x8] sm:$0xff]
        %v239 = vld [vmem:[%s204 + $0x10] sm:$0xff]
        %v240 = vld [vmem:[%s204 + $0x18] sm:$0xff]
        %v241 = vld [vmem:[%s204 + $0x20] sm:$0xff]
        %v242 = vld [vmem:[%s204 + $0x28] sm:$0xff]
        %v243 = vld [vmem:[%s204 + $0x30] sm:$0xff]
        %v244 = vld [vmem:[%s204 + $0x38] sm:$0xff]
        %v253 = vunpack.c.l.b16 %v229
        %v254 = vunpack.c.l.b16 %v230
        %v255 = vunpack.c.l.b16 %v231
        %v256 = vunpack.c.l.b16 %v232
        %v257 = vunpack.c.l.b16 %v233
        %v258 = vunpack.c.l.b16 %v234
        %v259 = vunpack.c.l.b16 %v235
        %v260 = vunpack.c.l.b16 %v236
        %v261 = vpack.c.b16 %v254, %v253
        %v262 = vpack.c.b16 %v256, %v255
        %v263 = vpack.c.b16 %v258, %v257
        %v264 = vpack.c.b16 %v260, %v259
        %v273 = vunpack.c.l.b16 %v237
        %v274 = vunpack.c.h.b16 %v237
        %v275 = vunpack.c.l.b16 %v238
        %v276 = vunpack.c.h.b16 %v238
        %v277 = vunpack.c.l.b16 %v239
        %v278 = vunpack.c.h.b16 %v239
        %v279 = vunpack.c.l.b16 %v240
        %v280 = vunpack.c.h.b16 %v240
        %v281 = vunpack.c.l.b16 %v241
        %v282 = vunpack.c.h.b16 %v241
        %v283 = vunpack.c.l.b16 %v242
        %v284 = vunpack.c.h.b16 %v242
        %v285 = vunpack.c.l.b16 %v243
        %v286 = vunpack.c.h.b16 %v243
        %v287 = vunpack.c.l.b16 %v244
        %v288 = vunpack.c.h.b16 %v244
        %v289 = vpack.c.b16 %v277, %v273
        %v290 = vpack.c.b16 %v278, %v274
        %v291 = vpack.c.b16 %v279, %v275
        %v292 = vpack.c.b16 %v280, %v276
        %v293 = vpack.c.b16 %v285, %v281
        %v294 = vpack.c.b16 %v286, %v282
        %v295 = vpack.c.b16 %v287, %v283
        %v296 = vpack.c.b16 %v288, %v284
        %vm305 = vcmask 261120
        %v307 = vsel %vm305, %v261, 0
        %v310 = vsel %vm305, %v262, 0
        %v313 = vsel %vm305, %v263, 0
        %v316 = vsel %vm305, %v264, 0
        %318 = vmatprep.subr.bf16.mxu0 0
        %319 = vmatpush1.bf16.msra.mxu0 0
        %320 = vmatprep.subr.bf16.mxu0 0
        %321 = vmatpush1.bf16.msra.mxu0 0
        %322 = vmatprep.subr.bf16.mxu0 0
        %323 = vmatpush1.bf16.msra.mxu0 0
        %324 = vmatprep.subr.bf16.mxu0 0
        %325 = vmatpush1.bf16.msra.mxu0 0
        %326 = vmatprep.subr.bf16.mxu0 0
        %327 = vmatpush1.bf16.msra.mxu0 0
        %328 = vmatprep.subr.bf16.mxu0 0
        %329 = vmatpush1.bf16.msra.mxu0 0
        %330 = vmatprep.subr.bf16.mxu0 %v294
        %331 = vmatpush1.bf16.msra.mxu0 %v293
        %332 = vmatprep.subr.bf16.mxu0 %v290
        %333 = vmatpush1.bf16.msra.mxu0 %v289
        %334 = vmatprep.subr.bf16.mxu0 0
        %335 = vmatpush2.bf16.msra.mxu0 0
        %336 = vmatprep.subr.bf16.mxu0 0
        %337 = vmatpush2.bf16.msra.mxu0 0
        %338 = vmatprep.subr.bf16.mxu0 0
        %339 = vmatpush2.bf16.msra.mxu0 0
        %340 = vmatprep.subr.bf16.mxu0 0
        %341 = vmatpush2.bf16.msra.mxu0 0
        %342 = vmatprep.subr.bf16.mxu0 0
        %343 = vmatpush2.bf16.msra.mxu0 0
        %344 = vmatprep.subr.bf16.mxu0 0
        %345 = vmatpush2.bf16.msra.mxu0 0
        %346 = vmatprep.subr.bf16.mxu0 0
        %347 = vmatpush2.bf16.msra.mxu0 0
        %348 = vmatprep.subr.bf16.mxu0 0
        %349 = vmatpush2.bf16.msra.mxu0 0
        %350 = vmatprep.mubr.bf16.mxu0 0
        %351 = vmatmul.mubr.bf16.gmra.mxu0 %v307
        %v352 = vpop.f32.mrf.mxu0
        %v353 = vadd.f32 0.0, %v352
        %v354 = vpop.f32.mrf.mxu0
        %v355 = vadd.f32 0.0, %v354
        %v356 = vpop.f32.mrf.mxu0
        %v357 = vadd.f32 0.0, %v356
        %v358 = vpop.f32.mrf.mxu0
        %v359 = vadd.f32 0.0, %v358
        %360 = vmatprep.mubr.bf16.mxu0 0
        %361 = vmatmul.mubr.bf16.gmra.mxu0 %v310
        %v362 = vpop.f32.mrf.mxu0
        %v363 = vadd.f32 0.0, %v362
        %v364 = vpop.f32.mrf.mxu0
        %v365 = vadd.f32 0.0, %v364
        %v366 = vpop.f32.mrf.mxu0
        %v367 = vadd.f32 0.0, %v366
        %v368 = vpop.f32.mrf.mxu0
        %v369 = vadd.f32 0.0, %v368
        %370 = vmatprep.mubr.bf16.mxu0 0
        %371 = vmatmul.mubr.bf16.gmra.mxu0 %v313
        %v372 = vpop.f32.mrf.mxu0
        %v373 = vadd.f32 0.0, %v372
        %v374 = vpop.f32.mrf.mxu0
        %v375 = vadd.f32 0.0, %v374
        %v376 = vpop.f32.mrf.mxu0
        %v377 = vadd.f32 0.0, %v376
        %v378 = vpop.f32.mrf.mxu0
        %v379 = vadd.f32 0.0, %v378
        %380 = vmatprep.mubr.bf16.mxu0 0
        %381 = vmatmul.mubr.bf16.gmra.mxu0 %v316
        %v382 = vpop.f32.mrf.mxu0
        %v383 = vadd.f32 0.0, %v382
        %v384 = vpop.f32.mrf.mxu0
        %v385 = vadd.f32 0.0, %v384
        %v386 = vpop.f32.mrf.mxu0
        %v387 = vadd.f32 0.0, %v386
        %v388 = vpop.f32.mrf.mxu0
        %v389 = vadd.f32 0.0, %v388
        %390 = vdwg.mxu0
        %391 = vmatprep.subr.bf16.mxu0 0
        %392 = vmatpush1.bf16.msra.mxu0 0
        %393 = vmatprep.subr.bf16.mxu0 0
        %394 = vmatpush1.bf16.msra.mxu0 0
        %395 = vmatprep.subr.bf16.mxu0 0
        %396 = vmatpush1.bf16.msra.mxu0 0
        %397 = vmatprep.subr.bf16.mxu0 0
        %398 = vmatpush1.bf16.msra.mxu0 0
        %399 = vmatprep.subr.bf16.mxu0 0
        %400 = vmatpush1.bf16.msra.mxu0 0
        %401 = vmatprep.subr.bf16.mxu0 0
        %402 = vmatpush1.bf16.msra.mxu0 0
        %403 = vmatprep.subr.bf16.mxu0 %v296
        %404 = vmatpush1.bf16.msra.mxu0 %v295
        %405 = vmatprep.subr.bf16.mxu0 %v292
        %406 = vmatpush1.bf16.msra.mxu0 %v291
        %407 = vmatprep.subr.bf16.mxu0 0
        %408 = vmatpush2.bf16.msra.mxu0 0
        %409 = vmatprep.subr.bf16.mxu0 0
        %410 = vmatpush2.bf16.msra.mxu0 0
        %411 = vmatprep.subr.bf16.mxu0 0
        %412 = vmatpush2.bf16.msra.mxu0 0
        %413 = vmatprep.subr.bf16.mxu0 0
        %414 = vmatpush2.bf16.msra.mxu0 0
        %415 = vmatprep.subr.bf16.mxu0 0
        %416 = vmatpush2.bf16.msra.mxu0 0
        %417 = vmatprep.subr.bf16.mxu0 0
        %418 = vmatpush2.bf16.msra.mxu0 0
        %419 = vmatprep.subr.bf16.mxu0 0
        %420 = vmatpush2.bf16.msra.mxu0 0
        %421 = vmatprep.subr.bf16.mxu0 0
        %422 = vmatpush2.bf16.msra.mxu0 0
        %423 = vmatprep.mubr.bf16.mxu0 0
        %424 = vmatmul.mubr.bf16.gmra.mxu0 %v307
        %v425 = vpop.f32.mrf.mxu0
        %v426 = vadd.f32 0.0, %v425
        %v427 = vpop.f32.mrf.mxu0
        %v428 = vadd.f32 0.0, %v427
        %v429 = vpop.f32.mrf.mxu0
        %v430 = vadd.f32 0.0, %v429
        %v431 = vpop.f32.mrf.mxu0
        %v432 = vadd.f32 0.0, %v431
        %433 = vmatprep.mubr.bf16.mxu0 0
        %434 = vmatmul.mubr.bf16.gmra.mxu0 %v310
        %v435 = vpop.f32.mrf.mxu0
        %v436 = vadd.f32 0.0, %v435
        %v437 = vpop.f32.mrf.mxu0
        %v438 = vadd.f32 0.0, %v437
        %v439 = vpop.f32.mrf.mxu0
        %v440 = vadd.f32 0.0, %v439
        %v441 = vpop.f32.mrf.mxu0
        %v442 = vadd.f32 0.0, %v441
        %443 = vmatprep.mubr.bf16.mxu0 0
        %444 = vmatmul.mubr.bf16.gmra.mxu0 %v313
        %v445 = vpop.f32.mrf.mxu0
        %v446 = vadd.f32 0.0, %v445
        %v447 = vpop.f32.mrf.mxu0
        %v448 = vadd.f32 0.0, %v447
        %v449 = vpop.f32.mrf.mxu0
        %v450 = vadd.f32 0.0, %v449
        %v451 = vpop.f32.mrf.mxu0
        %v452 = vadd.f32 0.0, %v451
        %453 = vmatprep.mubr.bf16.mxu0 0
        %454 = vmatmul.mubr.bf16.gmra.mxu0 %v316
        %v455 = vpop.f32.mrf.mxu0
        %v456 = vadd.f32 0.0, %v455
        %v457 = vpop.f32.mrf.mxu0
        %v458 = vadd.f32 0.0, %v457
        %v459 = vpop.f32.mrf.mxu0
        %v460 = vadd.f32 0.0, %v459
        %v461 = vpop.f32.mrf.mxu0
        %v462 = vadd.f32 0.0, %v461
        %463 = vdwg.mxu0
        %v464 = vld [vmem:[%s2] sm:$0xff]
        %v465 = vld [vmem:[%s2 + $0x8] sm:$0xff]
        %v466 = vld [vmem:[%s2 + $0x10] sm:$0xff]
        %v467 = vld [vmem:[%s2 + $0x18] sm:$0xff]
        %v468 = vld [vmem:[%s2 + $0x20] sm:$0xff]
        %v469 = vld [vmem:[%s2 + $0x28] sm:$0xff]
        %v470 = vld [vmem:[%s2 + $0x30] sm:$0xff]
        %v471 = vld [vmem:[%s2 + $0x38] sm:$0xff]
        %473 = vset.pattern.permute.xlu0 0
        %474 = vperm.xlu0 %473, %v464
        %v475 = vpop.permute.xlu0 %474
        %478 = vset.pattern.permute.xlu0 0
        %479 = vperm.xlu0 %478, %v465
        %v480 = vpop.permute.xlu0 %479
        %483 = vset.pattern.permute.xlu0 0
        %484 = vperm.xlu0 %483, %v466
        %v485 = vpop.permute.xlu0 %484
        %488 = vset.pattern.permute.xlu0 0
        %489 = vperm.xlu0 %488, %v467
        %v490 = vpop.permute.xlu0 %489
        %493 = vset.pattern.permute.xlu0 0
        %494 = vperm.xlu0 %493, %v468
        %v495 = vpop.permute.xlu0 %494
        %498 = vset.pattern.permute.xlu0 0
        %499 = vperm.xlu0 %498, %v469
        %v500 = vpop.permute.xlu0 %499
        %503 = vset.pattern.permute.xlu0 0
        %504 = vperm.xlu0 %503, %v470
        %v505 = vpop.permute.xlu0 %504
        %508 = vset.pattern.permute.xlu0 0
        %509 = vperm.xlu0 %508, %v471
        %v510 = vpop.permute.xlu0 %509
        %v512 = vmul.f32 %v353, %v475
        %v513 = vmul.f32 %v355, %v475
        %v514 = vmul.f32 %v426, %v475
        %v515 = vmul.f32 %v428, %v475
        %v516 = vmul.f32 %v357, %v480
        %v517 = vmul.f32 %v359, %v480
        %v518 = vmul.f32 %v430, %v480
        %v519 = vmul.f32 %v432, %v480
        %v520 = vmul.f32 %v363, %v485
        %v521 = vmul.f32 %v365, %v485
        %v522 = vmul.f32 %v436, %v485
        %v523 = vmul.f32 %v438, %v485
        %v524 = vmul.f32 %v367, %v490
        %v525 = vmul.f32 %v369, %v490
        %v526 = vmul.f32 %v440, %v490
        %v527 = vmul.f32 %v442, %v490
        %v528 = vmul.f32 %v373, %v495
        %v529 = vmul.f32 %v375, %v495
        %v530 = vmul.f32 %v446, %v495
        %v531 = vmul.f32 %v448, %v495
        %v532 = vmul.f32 %v377, %v500
        %v533 = vmul.f32 %v379, %v500
        %v534 = vmul.f32 %v450, %v500
        %v535 = vmul.f32 %v452, %v500
        %v536 = vmul.f32 %v383, %v505
        %v537 = vmul.f32 %v385, %v505
        %v538 = vmul.f32 %v456, %v505
        %v539 = vmul.f32 %v458, %v505
        %v540 = vmul.f32 %v387, %v510
        %v541 = vmul.f32 %v389, %v510
        %v542 = vmul.f32 %v460, %v510
        %v543 = vmul.f32 %v462, %v510
        %v544 = vld [vmem:[%s3] sm:$0xff]
        %v545 = vld [vmem:[%s3 + $0x8] sm:$0xff]
        %v546 = vld [vmem:[%s3 + $0x10] sm:$0xff]
        %v547 = vld [vmem:[%s3 + $0x18] sm:$0xff]
        %v548 = vld [vmem:[%s3 + $0x20] sm:$0xff]
        %v549 = vld [vmem:[%s3 + $0x28] sm:$0xff]
        %v550 = vld [vmem:[%s3 + $0x30] sm:$0xff]
        %v551 = vld [vmem:[%s3 + $0x38] sm:$0xff]
        %553 = vset.pattern.permute.xlu0 0
        %554 = vperm.xlu0 %553, %v544
        %v555 = vpop.permute.xlu0 %554
        %558 = vset.pattern.permute.xlu0 0
        %559 = vperm.xlu0 %558, %v545
        %v560 = vpop.permute.xlu0 %559
        %563 = vset.pattern.permute.xlu0 0
        %564 = vperm.xlu0 %563, %v546
        %v565 = vpop.permute.xlu0 %564
        %568 = vset.pattern.permute.xlu0 0
        %569 = vperm.xlu0 %568, %v547
        %v570 = vpop.permute.xlu0 %569
        %573 = vset.pattern.permute.xlu0 0
        %574 = vperm.xlu0 %573, %v548
        %v575 = vpop.permute.xlu0 %574
        %578 = vset.pattern.permute.xlu0 0
        %579 = vperm.xlu0 %578, %v549
        %v580 = vpop.permute.xlu0 %579
        %583 = vset.pattern.permute.xlu0 0
        %584 = vperm.xlu0 %583, %v550
        %v585 = vpop.permute.xlu0 %584
        %588 = vset.pattern.permute.xlu0 0
        %589 = vperm.xlu0 %588, %v551
        %v590 = vpop.permute.xlu0 %589
        %v592 = vadd.f32 %v512, %v555
        %v593 = vadd.f32 %v513, %v555
        %v594 = vadd.f32 %v514, %v555
        %v595 = vadd.f32 %v515, %v555
        %v596 = vadd.f32 %v516, %v560
        %v597 = vadd.f32 %v517, %v560
        %v598 = vadd.f32 %v518, %v560
        %v599 = vadd.f32 %v519, %v560
        %v600 = vadd.f32 %v520, %v565
        %v601 = vadd.f32 %v521, %v565
        %v602 = vadd.f32 %v522, %v565
        %v603 = vadd.f32 %v523, %v565
        %v604 = vadd.f32 %v524, %v570
        %v605 = vadd.f32 %v525, %v570
        %v606 = vadd.f32 %v526, %v570
        %v607 = vadd.f32 %v527, %v570
        %v608 = vadd.f32 %v528, %v575
        %v609 = vadd.f32 %v529, %v575
        %v610 = vadd.f32 %v530, %v575
        %v611 = vadd.f32 %v531, %v575
        %v612 = vadd.f32 %v532, %v580
        %v613 = vadd.f32 %v533, %v580
        %v614 = vadd.f32 %v534, %v580
        %v615 = vadd.f32 %v535, %v580
        %v616 = vadd.f32 %v536, %v585
        %v617 = vadd.f32 %v537, %v585
        %v618 = vadd.f32 %v538, %v585
        %v619 = vadd.f32 %v539, %v585
        %v620 = vadd.f32 %v540, %v590
        %v621 = vadd.f32 %v541, %v590
        %v622 = vadd.f32 %v542, %v590
        %v623 = vadd.f32 %v543, %v590
        %vm624 = vcmp.ge.f32.partialorder %v592, 0.0
        %vm625 = vcmp.ge.f32.partialorder %v593, 0.0
        %vm626 = vcmp.ge.f32.partialorder %v594, 0.0
        %vm627 = vcmp.ge.f32.partialorder %v595, 0.0
        %vm628 = vcmp.ge.f32.partialorder %v596, 0.0
        %vm629 = vcmp.ge.f32.partialorder %v597, 0.0
        %vm630 = vcmp.ge.f32.partialorder %v598, 0.0
        %vm631 = vcmp.ge.f32.partialorder %v599, 0.0
        %vm632 = vcmp.ge.f32.partialorder %v600, 0.0
        %vm633 = vcmp.ge.f32.partialorder %v601, 0.0
        %vm634 = vcmp.ge.f32.partialorder %v602, 0.0
        %vm635 = vcmp.ge.f32.partialorder %v603, 0.0
        %vm636 = vcmp.ge.f32.partialorder %v604, 0.0
        %vm637 = vcmp.ge.f32.partialorder %v605, 0.0
        %vm638 = vcmp.ge.f32.partialorder %v606, 0.0
        %vm639 = vcmp.ge.f32.partialorder %v607, 0.0
        %vm640 = vcmp.ge.f32.partialorder %v608, 0.0
        %vm641 = vcmp.ge.f32.partialorder %v609, 0.0
        %vm642 = vcmp.ge.f32.partialorder %v610, 0.0
        %vm643 = vcmp.ge.f32.partialorder %v611, 0.0
        %vm644 = vcmp.ge.f32.partialorder %v612, 0.0
        %vm645 = vcmp.ge.f32.partialorder %v613, 0.0
        %vm646 = vcmp.ge.f32.partialorder %v614, 0.0
        %vm647 = vcmp.ge.f32.partialorder %v615, 0.0
        %vm648 = vcmp.ge.f32.partialorder %v616, 0.0
        %vm649 = vcmp.ge.f32.partialorder %v617, 0.0
        %vm650 = vcmp.ge.f32.partialorder %v618, 0.0
        %vm651 = vcmp.ge.f32.partialorder %v619, 0.0
        %vm652 = vcmp.ge.f32.partialorder %v620, 0.0
        %vm653 = vcmp.ge.f32.partialorder %v621, 0.0
        %vm654 = vcmp.ge.f32.partialorder %v622, 0.0
        %vm655 = vcmp.ge.f32.partialorder %v623, 0.0
        %v656 = vmul.f32 %v592, 0.2
        %v657 = vmul.f32 %v593, 0.2
        %v658 = vmul.f32 %v594, 0.2
        %v659 = vmul.f32 %v595, 0.2
        %v660 = vmul.f32 %v596, 0.2
        %v661 = vmul.f32 %v597, 0.2
        %v662 = vmul.f32 %v598, 0.2
        %v663 = vmul.f32 %v599, 0.2
        %v664 = vmul.f32 %v600, 0.2
        %v665 = vmul.f32 %v601, 0.2
        %v666 = vmul.f32 %v602, 0.2
        %v667 = vmul.f32 %v603, 0.2
        %v668 = vmul.f32 %v604, 0.2
        %v669 = vmul.f32 %v605, 0.2
        %v670 = vmul.f32 %v606, 0.2
        %v671 = vmul.f32 %v607, 0.2
        %v672 = vmul.f32 %v608, 0.2
        %v673 = vmul.f32 %v609, 0.2
        %v674 = vmul.f32 %v610, 0.2
        %v675 = vmul.f32 %v611, 0.2
        %v676 = vmul.f32 %v612, 0.2
        %v677 = vmul.f32 %v613, 0.2
        %v678 = vmul.f32 %v614, 0.2
        %v679 = vmul.f32 %v615, 0.2
        %v680 = vmul.f32 %v616, 0.2
        %v681 = vmul.f32 %v617, 0.2
        %v682 = vmul.f32 %v618, 0.2
        %v683 = vmul.f32 %v619, 0.2
        %v684 = vmul.f32 %v620, 0.2
        %v685 = vmul.f32 %v621, 0.2
        %v686 = vmul.f32 %v622, 0.2
        %v687 = vmul.f32 %v623, 0.2
        %v688 = vsel %vm624, %v592, %v656
        %v689 = vsel %vm625, %v593, %v657
        %v690 = vsel %vm626, %v594, %v658
        %v691 = vsel %vm627, %v595, %v659
        %v692 = vsel %vm628, %v596, %v660
        %v693 = vsel %vm629, %v597, %v661
        %v694 = vsel %vm630, %v598, %v662
        %v695 = vsel %vm631, %v599, %v663
        %v696 = vsel %vm632, %v600, %v664
        %v697 = vsel %vm633, %v601, %v665
        %v698 = vsel %vm634, %v602, %v666
        %v699 = vsel %vm635, %v603, %v667
        %v700 = vsel %vm636, %v604, %v668
        %v701 = vsel %vm637, %v605, %v669
        %v702 = vsel %vm638, %v606, %v670
        %v703 = vsel %vm639, %v607, %v671
        %v704 = vsel %vm640, %v608, %v672
        %v705 = vsel %vm641, %v609, %v673
        %v706 = vsel %vm642, %v610, %v674
        %v707 = vsel %vm643, %v611, %v675
        %v708 = vsel %vm644, %v612, %v676
        %v709 = vsel %vm645, %v613, %v677
        %v710 = vsel %vm646, %v614, %v678
        %v711 = vsel %vm647, %v615, %v679
        %v712 = vsel %vm648, %v616, %v680
        %v713 = vsel %vm649, %v617, %v681
        %v714 = vsel %vm650, %v618, %v682
        %v715 = vsel %vm651, %v619, %v683
        %v716 = vsel %vm652, %v620, %v684
        %v717 = vsel %vm653, %v621, %v685
        %v718 = vsel %vm654, %v622, %v686
        %v719 = vsel %vm655, %v623, %v687
        %v720 = vpack.c.bf16 %v692, %v688
        %v721 = vpack.c.bf16 %v693, %v689
        %v722 = vpack.c.bf16 %v694, %v690
        %v723 = vpack.c.bf16 %v695, %v691
        %v724 = vpack.c.bf16 %v700, %v696
        %v725 = vpack.c.bf16 %v701, %v697
        %v726 = vpack.c.bf16 %v702, %v698
        %v727 = vpack.c.bf16 %v703, %v699
        %v728 = vpack.c.bf16 %v708, %v704
        %v729 = vpack.c.bf16 %v709, %v705
        %v730 = vpack.c.bf16 %v710, %v706
        %v731 = vpack.c.bf16 %v711, %v707
        %v732 = vpack.c.bf16 %v716, %v712
        %v733 = vpack.c.bf16 %v717, %v713
        %v734 = vpack.c.bf16 %v718, %v714
        %v735 = vpack.c.bf16 %v719, %v715
        %v752 = vunpack.c.l.b16 %v720
        %v753 = vunpack.c.l.b16 %v721
        %v754 = vunpack.c.l.b16 %v722
        %v755 = vunpack.c.l.b16 %v723
        %v756 = vunpack.c.h.b16 %v720
        %v757 = vunpack.c.h.b16 %v721
        %v758 = vunpack.c.h.b16 %v722
        %v759 = vunpack.c.h.b16 %v723
        %v760 = vunpack.c.l.b16 %v724
        %v761 = vunpack.c.l.b16 %v725
        %v762 = vunpack.c.l.b16 %v726
        %v763 = vunpack.c.l.b16 %v727
        %v764 = vunpack.c.h.b16 %v724
        %v765 = vunpack.c.h.b16 %v725
        %v766 = vunpack.c.h.b16 %v726
        %v767 = vunpack.c.h.b16 %v727
        %v768 = vunpack.c.l.b16 %v728
        %v769 = vunpack.c.l.b16 %v729
        %v770 = vunpack.c.l.b16 %v730
        %v771 = vunpack.c.l.b16 %v731
        %v772 = vunpack.c.h.b16 %v728
        %v773 = vunpack.c.h.b16 %v729
        %v774 = vunpack.c.h.b16 %v730
        %v775 = vunpack.c.h.b16 %v731
        %v776 = vunpack.c.l.b16 %v732
        %v777 = vunpack.c.l.b16 %v733
        %v778 = vunpack.c.l.b16 %v734
        %v779 = vunpack.c.l.b16 %v735
        %v780 = vunpack.c.h.b16 %v732
        %v781 = vunpack.c.h.b16 %v733
        %v782 = vunpack.c.h.b16 %v734
        %v783 = vunpack.c.h.b16 %v735
        %v784 = vpack.c.b16 %v753, %v752
        %v785 = vpack.c.b16 %v755, %v754
        %v786 = vpack.c.b16 %v757, %v756
        %v787 = vpack.c.b16 %v759, %v758
        %v788 = vpack.c.b16 %v761, %v760
        %v789 = vpack.c.b16 %v763, %v762
        %v790 = vpack.c.b16 %v765, %v764
        %v791 = vpack.c.b16 %v767, %v766
        %v792 = vpack.c.b16 %v769, %v768
        %v793 = vpack.c.b16 %v771, %v770
        %v794 = vpack.c.b16 %v773, %v772
        %v795 = vpack.c.b16 %v775, %v774
        %v796 = vpack.c.b16 %v777, %v776
        %v797 = vpack.c.b16 %v779, %v778
        %v798 = vpack.c.b16 %v781, %v780
        %v799 = vpack.c.b16 %v783, %v782
        %816 = vst [vmem:[%s225] sm:$0xff] %v784
        %817 = vst [vmem:[%s225 + $0x8] sm:$0xff] %v785
        %818 = vst [vmem:[%s225 + $0x10] sm:$0xff] %v786
        %819 = vst [vmem:[%s225 + $0x18] sm:$0xff] %v787
        %820 = vst [vmem:[%s225 + $0x20] sm:$0xff] %v788
        %821 = vst [vmem:[%s225 + $0x28] sm:$0xff] %v789
        %822 = vst [vmem:[%s225 + $0x30] sm:$0xff] %v790
        %823 = vst [vmem:[%s225 + $0x38] sm:$0xff] %v791
        %824 = vst [vmem:[%s225 + $0x40] sm:$0xff] %v792
        %825 = vst [vmem:[%s225 + $0x48] sm:$0xff] %v793
        %826 = vst [vmem:[%s225 + $0x50] sm:$0xff] %v794
        %827 = vst [vmem:[%s225 + $0x58] sm:$0xff] %v795
        %828 = vst [vmem:[%s225 + $0x60] sm:$0xff] %v796
        %829 = vst [vmem:[%s225 + $0x68] sm:$0xff] %v797
        %830 = vst [vmem:[%s225 + $0x70] sm:$0xff] %v798
        %831 = vst [vmem:[%s225 + $0x78] sm:$0xff] %v799
        %s832 = sand.u32 %s112, 1
        %s833 = sand.u32 %s112, 1
        %s834 = smul.addr %s833, 128
        %s835 = scalar_lea.vmem [#allocation3], %s834
        // Predicated region
        $region60: #{gate_deconv_forward.3} parent=54 // pred_check
          %p836 = pneg %p122
        $region61: #{gate_deconv_forward.3} parent=54 // pred_check_branch
          %838 = sbr.rel (%p836) target = $region63
        $region62: #{gate_deconv_forward.3} parent=54 // pred_region
          %s839 = smul.u32 4, %s15
          %s840 = smul.addr %s839, 4
          %s841 = scalar_lea.vmem %s4, %s840
          // Predicated region
          $region64: #{gate_deconv_forward.3} parent=62 // pred_check
            _
          $region65: #{gate_deconv_forward.3} parent=62 // pred_check_branch
            %843 = sbr.rel (0) target = $region67
          $region66: #{gate_deconv_forward.3} parent=62 // pred_region
            // Predicated region
            $region68: #{gate_deconv_forward.3} parent=66 // pred_check
              _
            $region69: #{gate_deconv_forward.3} parent=66 // pred_check_branch
              %845 = sbr.rel (0) target = $region71
            $region70: #{gate_deconv_forward.3} parent=66 // pred_region
              loop: start=0, step=1, limit=1
              $region72: #{gate_deconv_forward.3} parent=70 // loop_pre_header
                _
              $region73: #{gate_deconv_forward.3} parent=70 // loop_header
                %s847 = sphi 0, %s851
                %p848 = scmp.ge.s32.totalorder %s847, 1
                %s852 = sphi %s835, %s835
                %s853 = sphi %s841, %s841
              $region74: #{gate_deconv_forward.3} parent=70 // loop_header_branch
                %850 = sbr.rel (%p848) target = $region78
              $region75: #{gate_deconv_forward.3} parent=70 // loop_body
                %v854 = vld [vmem:[%s852] sm:$0xff]
                %855 = vst [vmem:[%s853] sm:$0xff] %v854
                %v856 = vld [vmem:[%s852 + $0x8] sm:$0xff]
                %857 = vst [vmem:[%s853 + $0x8] sm:$0xff] %v856
                %v858 = vld [vmem:[%s852 + $0x10] sm:$0xff]
                %859 = vst [vmem:[%s853 + $0x20] sm:$0xff] %v858
                %v860 = vld [vmem:[%s852 + $0x18] sm:$0xff]
                %861 = vst [vmem:[%s853 + $0x28] sm:$0xff] %v860
                %v862 = vld [vmem:[%s852 + $0x20] sm:$0xff]
                %863 = vst [vmem:[%s853 + $0x40] sm:$0xff] %v862
                %v864 = vld [vmem:[%s852 + $0x28] sm:$0xff]
                %865 = vst [vmem:[%s853 + $0x48] sm:$0xff] %v864
                %v866 = vld [vmem:[%s852 + $0x30] sm:$0xff]
                %867 = vst [vmem:[%s853 + $0x60] sm:$0xff] %v866
                %v868 = vld [vmem:[%s852 + $0x38] sm:$0xff]
                %869 = vst [vmem:[%s853 + $0x68] sm:$0xff] %v868
                %v870 = vld [vmem:[%s852 + $0x40] sm:$0xff]
                %871 = vst [vmem:[%s853 + $0x80] sm:$0xff] %v870
                %v872 = vld [vmem:[%s852 + $0x48] sm:$0xff]
                %873 = vst [vmem:[%s853 + $0x88] sm:$0xff] %v872
                %v874 = vld [vmem:[%s852 + $0x50] sm:$0xff]
                %875 = vst [vmem:[%s853 + $0xa0] sm:$0xff] %v874
                %v876 = vld [vmem:[%s852 + $0x58] sm:$0xff]
                %877 = vst [vmem:[%s853 + $0xa8] sm:$0xff] %v876
                %v878 = vld [vmem:[%s852 + $0x60] sm:$0xff]
                %879 = vst [vmem:[%s853 + $0xc0] sm:$0xff] %v878
                %v880 = vld [vmem:[%s852 + $0x68] sm:$0xff]
                %881 = vst [vmem:[%s853 + $0xc8] sm:$0xff] %v880
                %v882 = vld [vmem:[%s852 + $0x70] sm:$0xff]
                %883 = vst [vmem:[%s853 + $0xe0] sm:$0xff] %v882
                %v884 = vld [vmem:[%s852 + $0x78] sm:$0xff]
                %885 = vst [vmem:[%s853 + $0xe8] sm:$0xff] %v884
              $region76: #{gate_deconv_forward.3} parent=70 // loop_footer
                %s851 = sadd.s32 1, %s847
              $region77: #{gate_deconv_forward.3} parent=70 // loop_footer_branch
                %846 = sbr.rel target = $region73
              $region78: #{gate_deconv_forward.3} parent=70 // loop_exit
                _
            $region71: #{gate_deconv_forward.3} parent=66 // pred_fallthru
              _
            // Predicated region
            $region79: #{gate_deconv_forward.3} parent=66 // pred_check
              _
            $region80: #{gate_deconv_forward.3} parent=66 // pred_check_branch
              %887 = sbr.rel target = $region82
            $region81: #{gate_deconv_forward.3} parent=66 // pred_region
              _
            $region82: #{gate_deconv_forward.3} parent=66 // pred_fallthru
              _
          $region67: #{gate_deconv_forward.3} parent=62 // pred_fallthru
            _
          %888 = vnop
        $region63: #{gate_deconv_forward.3} parent=54 // pred_fallthru
          _
      $region55: #{gate_deconv_forward.3} parent=5 // pred_fallthru
        _
      %p889 = scmp.le.s32.totalorder 2, %s10
      // Predicated region
      $region83: #{gate_deconv_forward.3} parent=5 // pred_check
        %p890 = pneg %p889
      $region84: #{gate_deconv_forward.3} parent=5 // pred_check_branch
        %892 = sbr.rel (%p890) target = $region86
      $region85: #{gate_deconv_forward.3} parent=5 // pred_region
        %s893 = ssub.s32 %s10, 2
        // Predicated region
        $region87: #{gate_deconv_forward.3} parent=85 // pred_check
          %p894 = pneg %p128
        $region88: #{gate_deconv_forward.3} parent=85 // pred_check_branch
          %896 = sbr.rel (%p894) target = $region90
        $region89: #{gate_deconv_forward.3} parent=85 // pred_region
          %s897 = sand.u32 %s113, 1
          %s898 = sand.u32 %s113, 1
          %s899 = smul.addr %s898, 128
          %s900 = scalar_lea.vmem [#allocation3], %s899
        $region90: #{gate_deconv_forward.3} parent=85 // pred_fallthru
          _
      $region86: #{gate_deconv_forward.3} parent=5 // pred_fallthru
        _
    $region6: #{gate_deconv_forward.3} parent=1 // loop_footer
      %s14 = sadd.s32 1, %s10
    $region7: #{gate_deconv_forward.3} parent=1 // loop_footer_branch
      %9 = sbr.rel target = $region3
    $region8: #{gate_deconv_forward.3} parent=1 // loop_exit
      _

</llo_original>
